<compile_context>
chip_gen: v6e
topology: v6e:2x2x1
jax: 0.10.0
libtpu: 0.0.40
codegen_flags: <defaults>
</compile_context>

<pallas_src>
import functools

import jax
import jax.numpy as jnp
from jax import lax
from jax.experimental import pallas as pl
from jax.experimental.pallas import tpu as pltpu


def _step_vmem_bytes(B, L, S, D):
    """Approximate per-step VMEM footprint: double-buffered I/O blocks + f32 scratch +
    resident (constant-index_map) weight/bias tiles."""
    lane = max(D, 128)
    io = 2 * ((B * L * D + B * S * D) * 2 + B * L * D * 4)   # bf16 x/y + f32 out, x2 buffers
    scratch = (2 * B * L * D + 2 * B * S * D) * 4            # q, ctx, k, v (f32)
    weights = 2 * (4 * D * lane * 2 + 4 * 8 * lane * 4)      # 4 weight + 4 bias tiles, x2
    return io + scratch + weights


def _pick_batch_tile(N, L, S, D, budget_bytes, max_tile=8):
    """Largest batch tile that divides N, fits the VMEM budget and keeps unrolling small."""
    divisors = [b for b in range(1, min(N, max_tile) + 1) if N % b == 0]
    feasible = [b for b in divisors if _step_vmem_bytes(b, L, S, D) <= budget_bytes]
    b = max(feasible) if feasible else 1
    # v7x has 2 TensorCores: avoid a length-1 grid when the batch splits evenly.
    if N // b == 1 and N % 2 == 0 and N > 1:
        b = N // 2
    return b


def _vmem_limit_bytes(B, L, S, D):
    est = _step_vmem_bytes(B, L, S, D)
    # generous headroom, but never above v7x's 64 MiB physical VMEM per TensorCore
    return int(min(64 * 1024 * 1024, max(16 * 1024 * 1024, 2 * est)))


def _mha_kernel(x_ref, y_ref, wq_ref, wk_ref, wv_ref, wo_ref,
                bq_ref, bk_ref, bv_ref, bo_ref, o_ref,
                q_s, k_s, v_s, ctx_s,
                *, b_tile, q_len, kv_len, n_heads, head_dim):
    """One grid step = one tile of B batch elements, all heads."""
    B, L, S, H, Dh = b_tile, q_len, kv_len, n_heads, head_dim

    x = x_ref[...]                        # (B*L, D) bf16
    y = y_ref[...]                        # (B*S, D) bf16

    # Fused projections: single wide MXU pushes over all B*L / B*S rows
    # (bf16 operands, f32 accumulation).  1/sqrt(Dh) is pre-folded into wq/bq.
    q_s[...] = jnp.dot(x, wq_ref[...], preferred_element_type=jnp.float32) + bq_ref[...]
    k_s[...] = jnp.dot(y, wk_ref[...], preferred_element_type=jnp.float32) + bk_ref[...]
    v_s[...] = jnp.dot(y, wv_ref[...], preferred_element_type=jnp.float32) + bv_ref[...]

    # Attention per (batch element, head).  B and H are small compile-time constants
    # (fully unrolled); all slices are static Ref slices (views), not value lane-slices.
    for b in range(B):
        qr, kr = b * L, b * S
        for h in range(H):
            lo = h * Dh
            qh = q_s[qr:qr + L, lo:lo + Dh]          # (L, Dh) f32
            kh = k_s[kr:kr + S, lo:lo + Dh]          # (S, Dh) f32
            vh = v_s[kr:kr + S, lo:lo + Dh]          # (S, Dh) f32

            # scores: contract over head_dim -> (L, S); softmax kept in f32.
            s = lax.dot_general(qh, kh, (((1,), (1,)), ((), ())),
                                preferred_element_type=jnp.float32)
            s = s - jnp.max(s, axis=-1, keepdims=True)
            p = jnp.exp(s)
            p = p * pl.reciprocal(jnp.sum(p, axis=-1, keepdims=True), approx=True)

            ctx_s[qr:qr + L, lo:lo + Dh] = jnp.dot(
                p, vh, preferred_element_type=jnp.float32)           # (L, Dh)

    # Single output projection over the concatenated per-head context:
    # one (B*L, D) @ (D, D) MXU push instead of H rank-Dh accumulations.
    ctx = ctx_s[...].astype(jnp.bfloat16)
    o_ref[...] = jnp.dot(ctx, wo_ref[...],
                         preferred_element_type=jnp.float32) + bo_ref[...]


def temporal_cross_attention(x, y, in_proj_weight, in_proj_bias,
                             out_proj_weight, out_proj_bias, n_heads,
                             *, vmem_budget_bytes=8 << 20):
    """x: (L, N, D), y: (S, N, D), seq-first (PyTorch default layout).

    Returns (out, None), matching output_attention=False.
    """
    L, N, D = x.shape
    S, Ny, Dy = y.shape
    assert Ny == N and Dy == D
    H = n_heads
    assert D % H == 0
    Dh = D // H
    scale = Dh ** -0.5

    Wq, Wk, Wv = in_proj_weight[:D], in_proj_weight[D:2 * D], in_proj_weight[2 * D:]
    bq, bk, bv = in_proj_bias[:D], in_proj_bias[D:2 * D], in_proj_bias[2 * D:]

    # Weight-only preprocessing (one-time): fold the score scale into the Q projection,
    # transpose into (in, out) layout, and cast MXU operands to bf16.
    wq_t = (Wq.T * scale).astype(jnp.bfloat16)          # (D, D)
    wk_t = Wk.T.astype(jnp.bfloat16)                    # (D, D)
    wv_t = Wv.T.astype(jnp.bfloat16)                    # (D, D)
    wo_t = out_proj_weight.T.astype(jnp.bfloat16)       # (D, D)
    bq2 = (bq * scale).reshape(1, D).astype(jnp.float32)
    bk2 = bk.reshape(1, D).astype(jnp.float32)
    bv2 = bv.reshape(1, D).astype(jnp.float32)
    bo2 = out_proj_bias.reshape(1, D).astype(jnp.float32)

    # Cast to bf16 BEFORE the seq-first -> batch-first transpose (halves that HBM trip),
    # then flatten so the kernel sees lane-aligned 2-D (rows, D) slabs.
    x_flat = jnp.transpose(x.astype(jnp.bfloat16), (1, 0, 2)).reshape(N * L, D)
    y_flat = jnp.transpose(y.astype(jnp.bfloat16), (1, 0, 2)).reshape(N * S, D)

    B = _pick_batch_tile(N, L, S, D, vmem_budget_bytes)
    grid = (N // B,)
    kernel = functools.partial(_mha_kernel, b_tile=B, q_len=L, kv_len=S,
                               n_heads=H, head_dim=Dh)

    out_flat = pl.pallas_call(
        kernel,
        out_shape=jax.ShapeDtypeStruct((N * L, D), jnp.float32),
        grid_spec=pltpu.PrefetchScalarGridSpec(
            num_scalar_prefetch=0,
            grid=grid,
            in_specs=[
                pl.BlockSpec((B * L, D), lambda n: (n, 0)),     # x rows (batch tile)
                pl.BlockSpec((B * S, D), lambda n: (n, 0)),     # y rows (batch tile)
                pl.BlockSpec((D, D), lambda n: (0, 0)),         # Wq.T * scale (resident)
                pl.BlockSpec((D, D), lambda n: (0, 0)),         # Wk.T        (resident)
                pl.BlockSpec((D, D), lambda n: (0, 0)),         # Wv.T        (resident)
                pl.BlockSpec((D, D), lambda n: (0, 0)),         # Wo.T        (resident)
                pl.BlockSpec((1, D), lambda n: (0, 0)),         # bq * scale
                pl.BlockSpec((1, D), lambda n: (0, 0)),         # bk
                pl.BlockSpec((1, D), lambda n: (0, 0)),         # bv
                pl.BlockSpec((1, D), lambda n: (0, 0)),         # bo
            ],
            out_specs=pl.BlockSpec((B * L, D), lambda n: (n, 0)),
            scratch_shapes=[
                pltpu.VMEM((B * L, D), jnp.float32),   # q
                pltpu.VMEM((B * S, D), jnp.float32),   # k
                pltpu.VMEM((B * S, D), jnp.float32),   # v
                pltpu.VMEM((B * L, D), jnp.float32),   # concatenated per-head context
            ],
        ),
        compiler_params=pltpu.CompilerParams(
            dimension_semantics=("parallel",),         # megacore / 2-TC batch split
            vmem_limit_bytes=_vmem_limit_bytes(B, L, S, D),
        ),
    )(x_flat, y_flat, wq_t, wk_t, wv_t, wo_t, bq2, bk2, bv2, bo2)

    out = jnp.transpose(out_flat.reshape(N, L, D), (1, 0, 2))   # back to (L, N, D)
    return out, None                                            # output_attention=False


def _ref_forward(x, y, in_proj_weight, in_proj_bias,
                 out_proj_weight, out_proj_bias, n_heads):
    """Pure-JAX f32 reference mirroring nn.MultiheadAttention eval-mode forward."""
    L, N, D = x.shape
    S = y.shape[0]
    H = n_heads
    Dh = D // H
    Wq, Wk, Wv = in_proj_weight[:D], in_proj_weight[D:2 * D], in_proj_weight[2 * D:]
    bq, bk, bv = in_proj_bias[:D], in_proj_bias[D:2 * D], in_proj_bias[2 * D:]

    q = x @ Wq.T + bq                                   # (L, N, D)
    k = y @ Wk.T + bk                                   # (S, N, D)
    v = y @ Wv.T + bv
    qh = q.reshape(L, N, H, Dh).transpose(1, 2, 0, 3)   # (N, H, L, Dh)
    kh = k.reshape(S, N, H, Dh).transpose(1, 2, 0, 3)   # (N, H, S, Dh)
    vh = v.reshape(S, N, H, Dh).transpose(1, 2, 0, 3)
    s = jnp.einsum('nhld,nhsd->nhls', qh * (Dh ** -0.5), kh)
    p = jax.nn.softmax(s, axis=-1)
    ctx = jnp.einsum('nhls,nhsd->nhld', p, vh)          # (N, H, L, Dh)
    ctx = ctx.transpose(2, 0, 1, 3).reshape(L, N, D)
    return ctx @ out_proj_weight.T + out_proj_bias


if __name__ == "__main__":
    d_model, n_heads, dropout = 32, 4, 0.1   # dropout unused in eval-mode forward
    L, S, N = 8, 16, 2                       # query len, key/value len, batch

    key = jax.random.PRNGKey(0)
    kx, ky, kw, ko, kb1, kb2 = jax.random.split(key, 6)
    x = jax.random.normal(kx, (L, N, d_model), dtype=jnp.float32)
    y = jax.random.normal(ky, (S, N, d_model), dtype=jnp.float32)

    bound = (1.0 / d_model) ** 0.5
    in_proj_weight = jax.random.uniform(kw, (3 * d_model, d_model),
                                        jnp.float32, -bound, bound)
    in_proj_bias = jax.random.uniform(kb1, (3 * d_model,),
                                      jnp.float32, -bound, bound)
    out_proj_weight = jax.random.uniform(ko, (d_model, d_model),
                                         jnp.float32, -bound, bound)
    out_proj_bias = jax.random.uniform(kb2, (d_model,),
                                       jnp.float32, -bound, bound)

    out, attn = temporal_cross_attention(x, y, in_proj_weight, in_proj_bias,
                                         out_proj_weight, out_proj_bias, n_heads)
    out = jax.block_until_ready(out)

    ref = _ref_forward(x, y, in_proj_weight, in_proj_bias,
                       out_proj_weight, out_proj_bias, n_heads)
    assert out.shape == (L, N, d_model)
    assert attn is None
    max_err = float(jnp.max(jnp.abs(out - ref)))
    # Tolerance accounts for bf16 MXU operands (x/y blocks and all weight tiles; f32
    # accumulation) and the approximate EUP reciprocal in the softmax denominator.
    assert jnp.allclose(out, ref, atol=2e-2, rtol=2e-2), max_err
    print("KERNEL_OK")
</pallas_src>

<mosaic_0001>
module attributes {stable_mosaic.version = 11 : i64} {
  func.func @_mha_kernel(%arg0: i32, %arg1: memref<8x32xbf16, #tpu.memory_space<vmem>>, %arg2: memref<16x32xbf16, #tpu.memory_space<vmem>>, %arg3: memref<32x32xbf16, #tpu.memory_space<vmem>>, %arg4: memref<32x32xbf16, #tpu.memory_space<vmem>>, %arg5: memref<32x32xbf16, #tpu.memory_space<vmem>>, %arg6: memref<32x32xbf16, #tpu.memory_space<vmem>>, %arg7: memref<1x32xf32, #tpu.memory_space<vmem>>, %arg8: memref<1x32xf32, #tpu.memory_space<vmem>>, %arg9: memref<1x32xf32, #tpu.memory_space<vmem>>, %arg10: memref<1x32xf32, #tpu.memory_space<vmem>>, %arg11: memref<8x32xf32, #tpu.memory_space<vmem>>, %arg12: memref<8x32xf32, #tpu.memory_space<vmem>>, %arg13: memref<16x32xf32, #tpu.memory_space<vmem>>, %arg14: memref<16x32xf32, #tpu.memory_space<vmem>>, %arg15: memref<8x32xf32, #tpu.memory_space<vmem>>) attributes {dimension_semantics = [#tpu.dimension_semantics<parallel>], iteration_bounds = array<i64: 2>, scalar_prefetch = 0 : i64, scratch_operands = 4 : i64, tpu.core_type = #tpu.core_type<tc>, window_params = [{transform_indices = @transform_0, window_bounds = array<i64: 8, 32>}, {transform_indices = @transform_1, window_bounds = array<i64: 16, 32>}, {pipeline_mode = #tpu.pipeline_mode<synchronous>, transform_indices = @transform_2, window_bounds = array<i64: 32, 32>}, {pipeline_mode = #tpu.pipeline_mode<synchronous>, transform_indices = @transform_3, window_bounds = array<i64: 32, 32>}, {pipeline_mode = #tpu.pipeline_mode<synchronous>, transform_indices = @transform_4, window_bounds = array<i64: 32, 32>}, {pipeline_mode = #tpu.pipeline_mode<synchronous>, transform_indices = @transform_5, window_bounds = array<i64: 32, 32>}, {pipeline_mode = #tpu.pipeline_mode<synchronous>, transform_indices = @transform_6, window_bounds = array<i64: 1, 32>}, {pipeline_mode = #tpu.pipeline_mode<synchronous>, transform_indices = @transform_7, window_bounds = array<i64: 1, 32>}, {pipeline_mode = #tpu.pipeline_mode<synchronous>, transform_indices = @transform_8, window_bounds = array<i64: 1, 32>}, {pipeline_mode = #tpu.pipeline_mode<synchronous>, transform_indices = @transform_9, window_bounds = array<i64: 1, 32>}, {transform_indices = @transform_10, window_bounds = array<i64: 8, 32>}]} {
    %c0 = arith.constant 0 : index
    %c0_0 = arith.constant 0 : index
    %0 = vector.load %arg1[%c0, %c0_0] : memref<8x32xbf16, #tpu.memory_space<vmem>>, vector<8x32xbf16>
    %c0_1 = arith.constant 0 : index
    %c0_2 = arith.constant 0 : index
    %1 = vector.load %arg2[%c0_1, %c0_2] : memref<16x32xbf16, #tpu.memory_space<vmem>>, vector<16x32xbf16>
    %c0_3 = arith.constant 0 : index
    %c0_4 = arith.constant 0 : index
    %2 = vector.load %arg3[%c0_3, %c0_4] : memref<32x32xbf16, #tpu.memory_space<vmem>>, vector<32x32xbf16>
    %cst = arith.constant dense<0.000000e+00> : vector<8x32xf32>
    %3 = tpu.matmul %0, %2, %cst {dimension_numbers = #tpu.dot_dimension_numbers<[1], [0], [0], [1], [0, 0, 1, 1], [], []>} : vector<8x32xbf16>, vector<32x32xbf16>, vector<8x32xf32> -> vector<8x32xf32>
    %c0_5 = arith.constant 0 : index
    %c0_6 = arith.constant 0 : index
    %4 = vector.load %arg7[%c0_5, %c0_6] : memref<1x32xf32, #tpu.memory_space<vmem>>, vector<1x32xf32>
    %5 = vector.broadcast %4 : vector<1x32xf32> to vector<8x32xf32>
    %6 = arith.addf %3, %5 : vector<8x32xf32>
    %c0_7 = arith.constant 0 : index
    %c0_8 = arith.constant 0 : index
    %7 = vector.load %arg12[%c0_7, %c0_8] : memref<8x32xf32, #tpu.memory_space<vmem>>, vector<8x32xf32>
    tpu.vector_store %arg12[%c0_7, %c0_8], %6 {strides = array<i32>} : memref<8x32xf32, #tpu.memory_space<vmem>>, vector<8x32xf32>,
    %c0_9 = arith.constant 0 : index
    %c0_10 = arith.constant 0 : index
    %8 = vector.load %arg4[%c0_9, %c0_10] : memref<32x32xbf16, #tpu.memory_space<vmem>>, vector<32x32xbf16>
    %cst_11 = arith.constant dense<0.000000e+00> : vector<16x32xf32>
    %9 = tpu.matmul %1, %8, %cst_11 {dimension_numbers = #tpu.dot_dimension_numbers<[1], [0], [0], [1], [0, 0, 1, 1], [], []>} : vector<16x32xbf16>, vector<32x32xbf16>, vector<16x32xf32> -> vector<16x32xf32>
    %c0_12 = arith.constant 0 : index
    %c0_13 = arith.constant 0 : index
    %10 = vector.load %arg8[%c0_12, %c0_13] : memref<1x32xf32, #tpu.memory_space<vmem>>, vector<1x32xf32>
    %11 = vector.broadcast %10 : vector<1x32xf32> to vector<16x32xf32>
    %12 = arith.addf %9, %11 : vector<16x32xf32>
    %c0_14 = arith.constant 0 : index
    %c0_15 = arith.constant 0 : index
    %13 = vector.load %arg13[%c0_14, %c0_15] : memref<16x32xf32, #tpu.memory_space<vmem>>, vector<16x32xf32>
    tpu.vector_store %arg13[%c0_14, %c0_15], %12 {strides = array<i32>} : memref<16x32xf32, #tpu.memory_space<vmem>>, vector<16x32xf32>,
    %c0_16 = arith.constant 0 : index
    %c0_17 = arith.constant 0 : index
    %14 = vector.load %arg5[%c0_16, %c0_17] : memref<32x32xbf16, #tpu.memory_space<vmem>>, vector<32x32xbf16>
    %cst_18 = arith.constant dense<0.000000e+00> : vector<16x32xf32>
    %15 = tpu.matmul %1, %14, %cst_18 {dimension_numbers = #tpu.dot_dimension_numbers<[1], [0], [0], [1], [0, 0, 1, 1], [], []>} : vector<16x32xbf16>, vector<32x32xbf16>, vector<16x32xf32> -> vector<16x32xf32>
    %c0_19 = arith.constant 0 : index
    %c0_20 = arith.constant 0 : index
    %16 = vector.load %arg9[%c0_19, %c0_20] : memref<1x32xf32, #tpu.memory_space<vmem>>, vector<1x32xf32>
    %17 = vector.broadcast %16 : vector<1x32xf32> to vector<16x32xf32>
    %18 = arith.addf %15, %17 : vector<16x32xf32>
    %c0_21 = arith.constant 0 : index
    %c0_22 = arith.constant 0 : index
    %19 = vector.load %arg14[%c0_21, %c0_22] : memref<16x32xf32, #tpu.memory_space<vmem>>, vector<16x32xf32>
    tpu.vector_store %arg14[%c0_21, %c0_22], %18 {strides = array<i32>} : memref<16x32xf32, #tpu.memory_space<vmem>>, vector<16x32xf32>,
    %c0_23 = arith.constant 0 : index
    %c0_24 = arith.constant 0 : index
    %20 = vector.load %arg12[%c0_23, %c0_24] : memref<8x32xf32, #tpu.memory_space<vmem>>, vector<8x8xf32>
    %c0_25 = arith.constant 0 : index
    %c0_26 = arith.constant 0 : index
    %21 = vector.load %arg13[%c0_25, %c0_26] : memref<16x32xf32, #tpu.memory_space<vmem>>, vector<16x8xf32>
    %c0_27 = arith.constant 0 : index
    %c0_28 = arith.constant 0 : index
    %22 = vector.load %arg14[%c0_27, %c0_28] : memref<16x32xf32, #tpu.memory_space<vmem>>, vector<16x8xf32>
    %cst_29 = arith.constant dense<0.000000e+00> : vector<8x16xf32>
    %23 = tpu.matmul %20, %21, %cst_29 {dimension_numbers = #tpu.dot_dimension_numbers<[1], [1], [0], [0], [0, 0, 1, 0], [], []>} : vector<8x8xf32>, vector<16x8xf32>, vector<8x16xf32> -> vector<8x16xf32>
    %cst_30 = arith.constant dense<0xFF800000> : vector<8xf32>
    %24 = vector.multi_reduction <maximumf>, %23, %cst_30 [1] : vector<8x16xf32> to vector<8xf32>
    %25 = vector.shape_cast %24 : vector<8xf32> to vector<8x1xf32>
    %26 = vector.broadcast %25 : vector<8x1xf32> to vector<8x16xf32>
    %27 = arith.subf %23, %26 : vector<8x16xf32>
    %28 = math.exp %27 : vector<8x16xf32>
    %cst_31 = arith.constant dense<0.000000e+00> : vector<8xf32>
    %29 = vector.multi_reduction <add>, %28, %cst_31 [1] : vector<8x16xf32> to vector<8xf32>
    %30 = vector.shape_cast %29 : vector<8xf32> to vector<8x1xf32>
    %31 = tpu.reciprocal %30 {approx = true} : vector<8x1xf32> -> vector<8x1xf32>
    %32 = vector.broadcast %31 : vector<8x1xf32> to vector<8x16xf32>
    %33 = arith.mulf %28, %32 : vector<8x16xf32>
    %cst_32 = arith.constant dense<0.000000e+00> : vector<8x8xf32>
    %34 = tpu.matmul %33, %22, %cst_32 {dimension_numbers = #tpu.dot_dimension_numbers<[1], [0], [0], [1], [0, 0, 1, 1], [], []>} : vector<8x16xf32>, vector<16x8xf32>, vector<8x8xf32> -> vector<8x8xf32>
    %c0_33 = arith.constant 0 : index
    %c0_34 = arith.constant 0 : index
    %35 = vector.load %arg15[%c0_33, %c0_34] : memref<8x32xf32, #tpu.memory_space<vmem>>, vector<8x8xf32>
    tpu.vector_store %arg15[%c0_33, %c0_34], %34 {strides = array<i32>} : memref<8x32xf32, #tpu.memory_space<vmem>>, vector<8x8xf32>,
    %c0_35 = arith.constant 0 : index
    %c8 = arith.constant 8 : index
    %36 = vector.load %arg12[%c0_35, %c8] : memref<8x32xf32, #tpu.memory_space<vmem>>, vector<8x8xf32>
    %c0_36 = arith.constant 0 : index
    %c8_37 = arith.constant 8 : index
    %37 = vector.load %arg13[%c0_36, %c8_37] : memref<16x32xf32, #tpu.memory_space<vmem>>, vector<16x8xf32>
    %c0_38 = arith.constant 0 : index
    %c8_39 = arith.constant 8 : index
    %38 = vector.load %arg14[%c0_38, %c8_39] : memref<16x32xf32, #tpu.memory_space<vmem>>, vector<16x8xf32>
    %cst_40 = arith.constant dense<0.000000e+00> : vector<8x16xf32>
    %39 = tpu.matmul %36, %37, %cst_40 {dimension_numbers = #tpu.dot_dimension_numbers<[1], [1], [0], [0], [0, 0, 1, 0], [], []>} : vector<8x8xf32>, vector<16x8xf32>, vector<8x16xf32> -> vector<8x16xf32>
    %cst_41 = arith.constant dense<0xFF800000> : vector<8xf32>
    %40 = vector.multi_reduction <maximumf>, %39, %cst_41 [1] : vector<8x16xf32> to vector<8xf32>
    %41 = vector.shape_cast %40 : vector<8xf32> to vector<8x1xf32>
    %42 = vector.broadcast %41 : vector<8x1xf32> to vector<8x16xf32>
    %43 = arith.subf %39, %42 : vector<8x16xf32>
    %44 = math.exp %43 : vector<8x16xf32>
    %cst_42 = arith.constant dense<0.000000e+00> : vector<8xf32>
    %45 = vector.multi_reduction <add>, %44, %cst_42 [1] : vector<8x16xf32> to vector<8xf32>
    %46 = vector.shape_cast %45 : vector<8xf32> to vector<8x1xf32>
    %47 = tpu.reciprocal %46 {approx = true} : vector<8x1xf32> -> vector<8x1xf32>
    %48 = vector.broadcast %47 : vector<8x1xf32> to vector<8x16xf32>
    %49 = arith.mulf %44, %48 : vector<8x16xf32>
    %cst_43 = arith.constant dense<0.000000e+00> : vector<8x8xf32>
    %50 = tpu.matmul %49, %38, %cst_43 {dimension_numbers = #tpu.dot_dimension_numbers<[1], [0], [0], [1], [0, 0, 1, 1], [], []>} : vector<8x16xf32>, vector<16x8xf32>, vector<8x8xf32> -> vector<8x8xf32>
    %c0_44 = arith.constant 0 : index
    %c8_45 = arith.constant 8 : index
    %51 = vector.load %arg15[%c0_44, %c8_45] : memref<8x32xf32, #tpu.memory_space<vmem>>, vector<8x8xf32>
    tpu.vector_store %arg15[%c0_44, %c8_45], %50 {strides = array<i32>} : memref<8x32xf32, #tpu.memory_space<vmem>>, vector<8x8xf32>,
    %c0_46 = arith.constant 0 : index
    %c16 = arith.constant 16 : index
    %52 = vector.load %arg12[%c0_46, %c16] : memref<8x32xf32, #tpu.memory_space<vmem>>, vector<8x8xf32>
    %c0_47 = arith.constant 0 : index
    %c16_48 = arith.constant 16 : index
    %53 = vector.load %arg13[%c0_47, %c16_48] : memref<16x32xf32, #tpu.memory_space<vmem>>, vector<16x8xf32>
    %c0_49 = arith.constant 0 : index
    %c16_50 = arith.constant 16 : index
    %54 = vector.load %arg14[%c0_49, %c16_50] : memref<16x32xf32, #tpu.memory_space<vmem>>, vector<16x8xf32>
    %cst_51 = arith.constant dense<0.000000e+00> : vector<8x16xf32>
    %55 = tpu.matmul %52, %53, %cst_51 {dimension_numbers = #tpu.dot_dimension_numbers<[1], [1], [0], [0], [0, 0, 1, 0], [], []>} : vector<8x8xf32>, vector<16x8xf32>, vector<8x16xf32> -> vector<8x16xf32>
    %cst_52 = arith.constant dense<0xFF800000> : vector<8xf32>
    %56 = vector.multi_reduction <maximumf>, %55, %cst_52 [1] : vector<8x16xf32> to vector<8xf32>
    %57 = vector.shape_cast %56 : vector<8xf32> to vector<8x1xf32>
    %58 = vector.broadcast %57 : vector<8x1xf32> to vector<8x16xf32>
    %59 = arith.subf %55, %58 : vector<8x16xf32>
    %60 = math.exp %59 : vector<8x16xf32>
    %cst_53 = arith.constant dense<0.000000e+00> : vector<8xf32>
    %61 = vector.multi_reduction <add>, %60, %cst_53 [1] : vector<8x16xf32> to vector<8xf32>
    %62 = vector.shape_cast %61 : vector<8xf32> to vector<8x1xf32>
    %63 = tpu.reciprocal %62 {approx = true} : vector<8x1xf32> -> vector<8x1xf32>
    %64 = vector.broadcast %63 : vector<8x1xf32> to vector<8x16xf32>
    %65 = arith.mulf %60, %64 : vector<8x16xf32>
    %cst_54 = arith.constant dense<0.000000e+00> : vector<8x8xf32>
    %66 = tpu.matmul %65, %54, %cst_54 {dimension_numbers = #tpu.dot_dimension_numbers<[1], [0], [0], [1], [0, 0, 1, 1], [], []>} : vector<8x16xf32>, vector<16x8xf32>, vector<8x8xf32> -> vector<8x8xf32>
    %c0_55 = arith.constant 0 : index
    %c16_56 = arith.constant 16 : index
    %67 = vector.load %arg15[%c0_55, %c16_56] : memref<8x32xf32, #tpu.memory_space<vmem>>, vector<8x8xf32>
    tpu.vector_store %arg15[%c0_55, %c16_56], %66 {strides = array<i32>} : memref<8x32xf32, #tpu.memory_space<vmem>>, vector<8x8xf32>,
    %c0_57 = arith.constant 0 : index
    %c24 = arith.constant 24 : index
    %68 = vector.load %arg12[%c0_57, %c24] : memref<8x32xf32, #tpu.memory_space<vmem>>, vector<8x8xf32>
    %c0_58 = arith.constant 0 : index
    %c24_59 = arith.constant 24 : index
    %69 = vector.load %arg13[%c0_58, %c24_59] : memref<16x32xf32, #tpu.memory_space<vmem>>, vector<16x8xf32>
    %c0_60 = arith.constant 0 : index
    %c24_61 = arith.constant 24 : index
    %70 = vector.load %arg14[%c0_60, %c24_61] : memref<16x32xf32, #tpu.memory_space<vmem>>, vector<16x8xf32>
    %cst_62 = arith.constant dense<0.000000e+00> : vector<8x16xf32>
    %71 = tpu.matmul %68, %69, %cst_62 {dimension_numbers = #tpu.dot_dimension_numbers<[1], [1], [0], [0], [0, 0, 1, 0], [], []>} : vector<8x8xf32>, vector<16x8xf32>, vector<8x16xf32> -> vector<8x16xf32>
    %cst_63 = arith.constant dense<0xFF800000> : vector<8xf32>
    %72 = vector.multi_reduction <maximumf>, %71, %cst_63 [1] : vector<8x16xf32> to vector<8xf32>
    %73 = vector.shape_cast %72 : vector<8xf32> to vector<8x1xf32>
    %74 = vector.broadcast %73 : vector<8x1xf32> to vector<8x16xf32>
    %75 = arith.subf %71, %74 : vector<8x16xf32>
    %76 = math.exp %75 : vector<8x16xf32>
    %cst_64 = arith.constant dense<0.000000e+00> : vector<8xf32>
    %77 = vector.multi_reduction <add>, %76, %cst_64 [1] : vector<8x16xf32> to vector<8xf32>
    %78 = vector.shape_cast %77 : vector<8xf32> to vector<8x1xf32>
    %79 = tpu.reciprocal %78 {approx = true} : vector<8x1xf32> -> vector<8x1xf32>
    %80 = vector.broadcast %79 : vector<8x1xf32> to vector<8x16xf32>
    %81 = arith.mulf %76, %80 : vector<8x16xf32>
    %cst_65 = arith.constant dense<0.000000e+00> : vector<8x8xf32>
    %82 = tpu.matmul %81, %70, %cst_65 {dimension_numbers = #tpu.dot_dimension_numbers<[1], [0], [0], [1], [0, 0, 1, 1], [], []>} : vector<8x16xf32>, vector<16x8xf32>, vector<8x8xf32> -> vector<8x8xf32>
    %c0_66 = arith.constant 0 : index
    %c24_67 = arith.constant 24 : index
    %83 = vector.load %arg15[%c0_66, %c24_67] : memref<8x32xf32, #tpu.memory_space<vmem>>, vector<8x8xf32>
    tpu.vector_store %arg15[%c0_66, %c24_67], %82 {strides = array<i32>} : memref<8x32xf32, #tpu.memory_space<vmem>>, vector<8x8xf32>,
    %c0_68 = arith.constant 0 : index
    %c0_69 = arith.constant 0 : index
    %84 = vector.load %arg15[%c0_68, %c0_69] : memref<8x32xf32, #tpu.memory_space<vmem>>, vector<8x32xf32>
    %85 = arith.truncf %84 : vector<8x32xf32> to vector<8x32xbf16>
    %c0_70 = arith.constant 0 : index
    %c0_71 = arith.constant 0 : index
    %86 = vector.load %arg6[%c0_70, %c0_71] : memref<32x32xbf16, #tpu.memory_space<vmem>>, vector<32x32xbf16>
    %cst_72 = arith.constant dense<0.000000e+00> : vector<8x32xf32>
    %87 = tpu.matmul %85, %86, %cst_72 {dimension_numbers = #tpu.dot_dimension_numbers<[1], [0], [0], [1], [0, 0, 1, 1], [], []>} : vector<8x32xbf16>, vector<32x32xbf16>, vector<8x32xf32> -> vector<8x32xf32>
    %c0_73 = arith.constant 0 : index
    %c0_74 = arith.constant 0 : index
    %88 = vector.load %arg10[%c0_73, %c0_74] : memref<1x32xf32, #tpu.memory_space<vmem>>, vector<1x32xf32>
    %89 = vector.broadcast %88 : vector<1x32xf32> to vector<8x32xf32>
    %90 = arith.addf %87, %89 : vector<8x32xf32>
    %c0_75 = arith.constant 0 : index
    %c0_76 = arith.constant 0 : index
    %91 = vector.load %arg11[%c0_75, %c0_76] : memref<8x32xf32, #tpu.memory_space<vmem>>, vector<8x32xf32>
    tpu.vector_store %arg11[%c0_75, %c0_76], %90 {strides = array<i32>} : memref<8x32xf32, #tpu.memory_space<vmem>>, vector<8x32xf32>,
    return
  }
  func.func @transform_0(%arg0: i32) -> (i32, i32) {
    %c0_i32 = arith.constant 0 : i32
    %c0_i32_0 = arith.constant 0 : i32
    return %arg0, %c0_i32 : i32, i32
  }
  func.func @transform_1(%arg0: i32) -> (i32, i32) {
    %c0_i32 = arith.constant 0 : i32
    %c0_i32_0 = arith.constant 0 : i32
    return %arg0, %c0_i32 : i32, i32
  }
  func.func @transform_2(%arg0: i32) -> (i32, i32) {
    %c0_i32 = arith.constant 0 : i32
    %c0_i32_0 = arith.constant 0 : i32
    %c0_i32_1 = arith.constant 0 : i32
    return %c0_i32, %c0_i32_0 : i32, i32
  }
  func.func @transform_3(%arg0: i32) -> (i32, i32) {
    %c0_i32 = arith.constant 0 : i32
    %c0_i32_0 = arith.constant 0 : i32
    %c0_i32_1 = arith.constant 0 : i32
    return %c0_i32, %c0_i32_0 : i32, i32
  }
  func.func @transform_4(%arg0: i32) -> (i32, i32) {
    %c0_i32 = arith.constant 0 : i32
    %c0_i32_0 = arith.constant 0 : i32
    %c0_i32_1 = arith.constant 0 : i32
    return %c0_i32, %c0_i32_0 : i32, i32
  }
  func.func @transform_5(%arg0: i32) -> (i32, i32) {
    %c0_i32 = arith.constant 0 : i32
    %c0_i32_0 = arith.constant 0 : i32
    %c0_i32_1 = arith.constant 0 : i32
    return %c0_i32, %c0_i32_0 : i32, i32
  }
  func.func @transform_6(%arg0: i32) -> (i32, i32) {
    %c0_i32 = arith.constant 0 : i32
    %c0_i32_0 = arith.constant 0 : i32
    %c0_i32_1 = arith.constant 0 : i32
    return %c0_i32, %c0_i32_0 : i32, i32
  }
  func.func @transform_7(%arg0: i32) -> (i32, i32) {
    %c0_i32 = arith.constant 0 : i32
    %c0_i32_0 = arith.constant 0 : i32
    %c0_i32_1 = arith.constant 0 : i32
    return %c0_i32, %c0_i32_0 : i32, i32
  }
  func.func @transform_8(%arg0: i32) -> (i32, i32) {
    %c0_i32 = arith.constant 0 : i32
    %c0_i32_0 = arith.constant 0 : i32
    %c0_i32_1 = arith.constant 0 : i32
    return %c0_i32, %c0_i32_0 : i32, i32
  }
  func.func @transform_9(%arg0: i32) -> (i32, i32) {
    %c0_i32 = arith.constant 0 : i32
    %c0_i32_0 = arith.constant 0 : i32
    %c0_i32_1 = arith.constant 0 : i32
    return %c0_i32, %c0_i32_0 : i32, i32
  }
  func.func @transform_10(%arg0: i32) -> (i32, i32) {
    %c0_i32 = arith.constant 0 : i32
    %c0_i32_0 = arith.constant 0 : i32
    return %arg0, %c0_i32 : i32, i32
  }
}

</mosaic_0001>

<llo_original>
// kernel: tpu_custom_call.1
$region0: #{tpu_custom_call.1}
  #allocation0 [shape = 'u32[]', space=smem, size = 0x4, offset = 0x4, fixed_abs, tag = 'smem constant byte address 0x4 - core index']
  #allocation1 [shape = 'u32[144,128]{1,0:T(1,128)}', space=vmem, size = 0x12000, scoped, tag = 'internal scratch']
  #allocation2 [shape = 'f32[8,32]{1,0:T(8,128)}', space=vmem, size = 0x1000, scoped, tag = 'scratch operand']
  #allocation3 [shape = 'f32[16,32]{1,0:T(8,128)}', space=vmem, size = 0x2000, scoped, tag = 'scratch operand']
  #allocation4 [shape = 'f32[16,32]{1,0:T(8,128)}', space=vmem, size = 0x2000, scoped, tag = 'scratch operand']
  #allocation5 [shape = 'f32[8,32]{1,0:T(8,128)}', space=vmem, size = 0x1000, scoped, tag = 'scratch operand']
  %s0 = inlined_call_operand.hbm [shape: bf16[16,32], index: 0, kind: input, shape index: {}]
  %s1 = inlined_call_operand.hbm [shape: bf16[32,32], index: 1, kind: input, shape index: {}]
  %s2 = inlined_call_operand.hbm [shape: bf16[32,32], index: 2, kind: input, shape index: {}]
  %s3 = inlined_call_operand.hbm [shape: bf16[32,32], index: 3, kind: input, shape index: {}]
  %s4 = inlined_call_operand.hbm [shape: bf16[32,32], index: 4, kind: input, shape index: {}]
  %s5 = inlined_call_operand.hbm [shape: bf16[32,32], index: 5, kind: input, shape index: {}]
  %s6 = inlined_call_operand.vmem [shape: f32[1,32], index: 6, kind: input, shape index: {}]
  %s7 = inlined_call_operand.vmem [shape: f32[1,32], index: 7, kind: input, shape index: {}]
  %s8 = inlined_call_operand.vmem [shape: f32[1,32], index: 8, kind: input, shape index: {}]
  %s9 = inlined_call_operand.vmem [shape: f32[1,32], index: 9, kind: input, shape index: {}]
  %s10 = inlined_call_operand.hbm [shape: f32[16,32], index: 10, kind: output, shape index: {}]
  %s11 = sld [smem:[#allocation0]]
  $region97: #{tpu_custom_call.1} parent=0
    _
  %s13 = ssub.s32 1, %s11
  %s14 = scalar_select 0, %s13, %s11
  $region1: #{tpu_custom_call.1} parent=0
    #allocation6 [shape = 'u8[4096]{0}', space=vmem, size = 0x1000, scoped, tag = 'input window, operand 0']
    #allocation7 [shape = 's32[2]{0}', space=sflag, size = 0x8, scoped, tag = 'scoped memory for tpu_custom_call.1']
    #allocation8 [shape = 's32[2]{0}', space=sflag, size = 0x8, scoped, tag = 'scoped memory for tpu_custom_call.1']
    #allocation9 [shape = 'u8[8192]{0}', space=vmem, size = 0x2000, scoped, tag = 'input window, operand 1']
    #allocation10 [shape = 's32[2]{0}', space=sflag, size = 0x8, scoped, tag = 'scoped memory for tpu_custom_call.1']
    #allocation11 [shape = 'u8[8192]{0}', space=vmem, size = 0x2000, scoped, tag = 'input window, operand 2, single buffered']
    #allocation12 [shape = 'u8[8192]{0}', space=vmem, size = 0x2000, scoped, tag = 'input window, operand 3, single buffered']
    #allocation13 [shape = 's32[1]{0}', space=sflag, size = 0x4, scoped, tag = 'scoped memory for tpu_custom_call.1']
    #allocation14 [shape = 'u8[8192]{0}', space=vmem, size = 0x2000, scoped, tag = 'input window, operand 4, single buffered']
    #allocation15 [shape = 'u8[8192]{0}', space=vmem, size = 0x2000, scoped, tag = 'input window, operand 5, single buffered']
    #allocation16 [shape = 's32[1]{0}', space=sflag, size = 0x4, scoped, tag = 'scoped memory for tpu_custom_call.1']
    #allocation17 [shape = 'u8[8192]{0}', space=vmem, size = 0x2000, scoped, tag = 'output window, operand 0']
    %15 = vsyncpa [#allocation7], 0
    %s16 = scalar_lea.sflag [#allocation7], 1
    %17 = vsyncpa %s16, 0
    %18 = vsyncpa [#allocation10], 0
    %s19 = scalar_lea.sflag [#allocation10], 1
    %20 = vsyncpa %s19, 0
    %21 = vsyncpa [#allocation13], 0
    %22 = vsyncpa [#allocation16], 0
    %23 = vsyncpa [#allocation8], 0
    %s24 = scalar_lea.sflag [#allocation8], 1
    %25 = vsyncpa %s24, 0
    loop: start=0, step=1, limit=4
    $region2: #{tpu_custom_call.1} parent=1 // loop_pre_header
      _
    $region3: #{tpu_custom_call.1} parent=1 // loop_header
      %s27 = sphi 0, %s31
      %p28 = scmp.ge.s32.totalorder %s27, 4
      %s37 = sphi 0, %s39
      %s40 = sphi 0, %s37
      %s41 = sphi 0, %s40
      %s57 = sphi 0, %s41
      %s63 = sphi 0, %s65
      %s66 = sphi 0, %s63
      %s67 = sphi 0, %s66
      %s83 = sphi 0, %s67
      %s87 = sphi 0, %s87
      %s89 = sphi 0, %s87
      %s90 = sphi 0, %s89
      %s104 = sphi 0, %s90
      %s108 = sphi 0, %s108
      %s110 = sphi 0, %s108
      %s111 = sphi 0, %s110
      %s125 = sphi 0, %s111
      %s129 = sphi 0, %s129
      %s131 = sphi 0, %s129
      %s132 = sphi 0, %s131
      %s146 = sphi 0, %s132
      %s150 = sphi 0, %s150
      %s152 = sphi 0, %s150
      %s153 = sphi 0, %s152
      %s167 = sphi 0, %s153
      %s171 = sphi 0, %s171
      %s173 = sphi 0, %s171
      %s174 = sphi 0, %s173
      %s188 = sphi 0, %s174
      %s192 = sphi 0, %s192
      %s194 = sphi 0, %s192
      %s195 = sphi 0, %s194
      %s209 = sphi 0, %s195
      %s213 = sphi 0, %s213
      %s215 = sphi 0, %s213
      %s216 = sphi 0, %s215
      %s230 = sphi 0, %s216
      %s234 = sphi 0, %s234
      %s236 = sphi 0, %s234
      %s237 = sphi 0, %s236
      %s251 = sphi 0, %s237
      %s257 = sphi 0, %s259
      %s260 = sphi 0, %s257
      %s261 = sphi 0, %s260
      %s277 = sphi 0, %s261
    $region4: #{tpu_custom_call.1} parent=1 // loop_header_branch
      %30 = sbr.rel (%p28) target = $region8
    $region5: #{tpu_custom_call.1} parent=1 // loop_body
      %s32 = ssub.s32 %s27, 1
      %s33 = ssub.s32 %s27, 2
      %s34 = sadd.s32 %s27, 1
      %s35 = ssub.s32 %s27, %s34
      %p36 = scmp.eq.s32.totalorder %s35, 0
      %s38 = sadd.s32 %s37, 1
      %s39 = scalar_select %p36, %s37, %s38
      %p42 = pneg %p36
      %p43 = scmp.eq.s32.totalorder %s27, 1
      %p44 = por %p42, %p43
      %p45 = scmp.ne.s32.totalorder %s37, %s40
      %p46 = scmp.eq.s32.totalorder %s27, 0
      %p47 = por %p45, %p46
      %p48 = scmp.ne.s32.totalorder %s37, %s40
      %p49 = scmp.eq.s32.totalorder %s32, 1
      %p50 = por %p48, %p49
      %p51 = scmp.ne.s32.totalorder %s40, %s41
      %p52 = scmp.eq.s32.totalorder %s32, 0
      %p53 = por %p51, %p52
      %p54 = scmp.ne.s32.totalorder %s40, %s41
      %p55 = scmp.eq.s32.totalorder %s33, 1
      %p56 = por %p54, %p55
      %p58 = scmp.ne.s32.totalorder %s41, %s57
      %p59 = scmp.eq.s32.totalorder %s33, 0
      %p60 = por %p58, %p59
      %s61 = ssub.s32 %s27, %s34
      %p62 = scmp.eq.s32.totalorder %s61, 0
      %s64 = sadd.s32 %s63, 1
      %s65 = scalar_select %p62, %s63, %s64
      %p68 = pneg %p62
      %p69 = scmp.eq.s32.totalorder %s27, 1
      %p70 = por %p68, %p69
      %p71 = scmp.ne.s32.totalorder %s63, %s66
      %p72 = scmp.eq.s32.totalorder %s27, 0
      %p73 = por %p71, %p72
      %p74 = scmp.ne.s32.totalorder %s63, %s66
      %p75 = scmp.eq.s32.totalorder %s32, 1
      %p76 = por %p74, %p75
      %p77 = scmp.ne.s32.totalorder %s66, %s67
      %p78 = scmp.eq.s32.totalorder %s32, 0
      %p79 = por %p77, %p78
      %p80 = scmp.ne.s32.totalorder %s66, %s67
      %p81 = scmp.eq.s32.totalorder %s33, 1
      %p82 = por %p80, %p81
      %p84 = scmp.ne.s32.totalorder %s67, %s83
      %p85 = scmp.eq.s32.totalorder %s33, 0
      %p86 = por %p84, %p85
      %s88 = sadd.s32 %s87, 1
      %p91 = scmp.eq.s32.totalorder %s27, 1
      %p92 = scmp.ne.s32.totalorder %s87, %s89
      %p93 = scmp.eq.s32.totalorder %s27, 0
      %p94 = por %p92, %p93
      %p95 = scmp.ne.s32.totalorder %s87, %s89
      %p96 = scmp.eq.s32.totalorder %s32, 1
      %p97 = por %p95, %p96
      %p98 = scmp.ne.s32.totalorder %s89, %s90
      %p99 = scmp.eq.s32.totalorder %s32, 0
      %p100 = por %p98, %p99
      %p101 = scmp.ne.s32.totalorder %s89, %s90
      %p102 = scmp.eq.s32.totalorder %s33, 1
      %p103 = por %p101, %p102
      %p105 = scmp.ne.s32.totalorder %s90, %s104
      %p106 = scmp.eq.s32.totalorder %s33, 0
      %p107 = por %p105, %p106
      %s109 = sadd.s32 %s108, 1
      %p112 = scmp.eq.s32.totalorder %s27, 1
      %p113 = scmp.ne.s32.totalorder %s108, %s110
      %p114 = scmp.eq.s32.totalorder %s27, 0
      %p115 = por %p113, %p114
      %p116 = scmp.ne.s32.totalorder %s108, %s110
      %p117 = scmp.eq.s32.totalorder %s32, 1
      %p118 = por %p116, %p117
      %p119 = scmp.ne.s32.totalorder %s110, %s111
      %p120 = scmp.eq.s32.totalorder %s32, 0
      %p121 = por %p119, %p120
      %p122 = scmp.ne.s32.totalorder %s110, %s111
      %p123 = scmp.eq.s32.totalorder %s33, 1
      %p124 = por %p122, %p123
      %p126 = scmp.ne.s32.totalorder %s111, %s125
      %p127 = scmp.eq.s32.totalorder %s33, 0
      %p128 = por %p126, %p127
      %s130 = sadd.s32 %s129, 1
      %p133 = scmp.eq.s32.totalorder %s27, 1
      %p134 = scmp.ne.s32.totalorder %s129, %s131
      %p135 = scmp.eq.s32.totalorder %s27, 0
      %p136 = por %p134, %p135
      %p137 = scmp.ne.s32.totalorder %s129, %s131
      %p138 = scmp.eq.s32.totalorder %s32, 1
      %p139 = por %p137, %p138
      %p140 = scmp.ne.s32.totalorder %s131, %s132
      %p141 = scmp.eq.s32.totalorder %s32, 0
      %p142 = por %p140, %p141
      %p143 = scmp.ne.s32.totalorder %s131, %s132
      %p144 = scmp.eq.s32.totalorder %s33, 1
      %p145 = por %p143, %p144
      %p147 = scmp.ne.s32.totalorder %s132, %s146
      %p148 = scmp.eq.s32.totalorder %s33, 0
      %p149 = por %p147, %p148
      %s151 = sadd.s32 %s150, 1
      %p154 = scmp.eq.s32.totalorder %s27, 1
      %p155 = scmp.ne.s32.totalorder %s150, %s152
      %p156 = scmp.eq.s32.totalorder %s27, 0
      %p157 = por %p155, %p156
      %p158 = scmp.ne.s32.totalorder %s150, %s152
      %p159 = scmp.eq.s32.totalorder %s32, 1
      %p160 = por %p158, %p159
      %p161 = scmp.ne.s32.totalorder %s152, %s153
      %p162 = scmp.eq.s32.totalorder %s32, 0
      %p163 = por %p161, %p162
      %p164 = scmp.ne.s32.totalorder %s152, %s153
      %p165 = scmp.eq.s32.totalorder %s33, 1
      %p166 = por %p164, %p165
      %p168 = scmp.ne.s32.totalorder %s153, %s167
      %p169 = scmp.eq.s32.totalorder %s33, 0
      %p170 = por %p168, %p169
      %s172 = sadd.s32 %s171, 1
      %p175 = scmp.eq.s32.totalorder %s27, 1
      %p176 = scmp.ne.s32.totalorder %s171, %s173
      %p177 = scmp.eq.s32.totalorder %s27, 0
      %p178 = por %p176, %p177
      %p179 = scmp.ne.s32.totalorder %s171, %s173
      %p180 = scmp.eq.s32.totalorder %s32, 1
      %p181 = por %p179, %p180
      %p182 = scmp.ne.s32.totalorder %s173, %s174
      %p183 = scmp.eq.s32.totalorder %s32, 0
      %p184 = por %p182, %p183
      %p185 = scmp.ne.s32.totalorder %s173, %s174
      %p186 = scmp.eq.s32.totalorder %s33, 1
      %p187 = por %p185, %p186
      %p189 = scmp.ne.s32.totalorder %s174, %s188
      %p190 = scmp.eq.s32.totalorder %s33, 0
      %p191 = por %p189, %p190
      %s193 = sadd.s32 %s192, 1
      %p196 = scmp.eq.s32.totalorder %s27, 1
      %p197 = scmp.ne.s32.totalorder %s192, %s194
      %p198 = scmp.eq.s32.totalorder %s27, 0
      %p199 = por %p197, %p198
      %p200 = scmp.ne.s32.totalorder %s192, %s194
      %p201 = scmp.eq.s32.totalorder %s32, 1
      %p202 = por %p200, %p201
      %p203 = scmp.ne.s32.totalorder %s194, %s195
      %p204 = scmp.eq.s32.totalorder %s32, 0
      %p205 = por %p203, %p204
      %p206 = scmp.ne.s32.totalorder %s194, %s195
      %p207 = scmp.eq.s32.totalorder %s33, 1
      %p208 = por %p206, %p207
      %p210 = scmp.ne.s32.totalorder %s195, %s209
      %p211 = scmp.eq.s32.totalorder %s33, 0
      %p212 = por %p210, %p211
      %s214 = sadd.s32 %s213, 1
      %p217 = scmp.eq.s32.totalorder %s27, 1
      %p218 = scmp.ne.s32.totalorder %s213, %s215
      %p219 = scmp.eq.s32.totalorder %s27, 0
      %p220 = por %p218, %p219
      %p221 = scmp.ne.s32.totalorder %s213, %s215
      %p222 = scmp.eq.s32.totalorder %s32, 1
      %p223 = por %p221, %p222
      %p224 = scmp.ne.s32.totalorder %s215, %s216
      %p225 = scmp.eq.s32.totalorder %s32, 0
      %p226 = por %p224, %p225
      %p227 = scmp.ne.s32.totalorder %s215, %s216
      %p228 = scmp.eq.s32.totalorder %s33, 1
      %p229 = por %p227, %p228
      %p231 = scmp.ne.s32.totalorder %s216, %s230
      %p232 = scmp.eq.s32.totalorder %s33, 0
      %p233 = por %p231, %p232
      %s235 = sadd.s32 %s234, 1
      %p238 = scmp.eq.s32.totalorder %s27, 1
      %p239 = scmp.ne.s32.totalorder %s234, %s236
      %p240 = scmp.eq.s32.totalorder %s27, 0
      %p241 = por %p239, %p240
      %p242 = scmp.ne.s32.totalorder %s234, %s236
      %p243 = scmp.eq.s32.totalorder %s32, 1
      %p244 = por %p242, %p243
      %p245 = scmp.ne.s32.totalorder %s236, %s237
      %p246 = scmp.eq.s32.totalorder %s32, 0
      %p247 = por %p245, %p246
      %p248 = scmp.ne.s32.totalorder %s236, %s237
      %p249 = scmp.eq.s32.totalorder %s33, 1
      %p250 = por %p248, %p249
      %p252 = scmp.ne.s32.totalorder %s237, %s251
      %p253 = scmp.eq.s32.totalorder %s33, 0
      %p254 = por %p252, %p253
      %s255 = ssub.s32 %s27, %s34
      %p256 = scmp.eq.s32.totalorder %s255, 0
      %s258 = sadd.s32 %s257, 1
      %s259 = scalar_select %p256, %s257, %s258
      %p262 = pneg %p256
      %p263 = scmp.eq.s32.totalorder %s27, 1
      %p264 = por %p262, %p263
      %p265 = scmp.ne.s32.totalorder %s257, %s260
      %p266 = scmp.eq.s32.totalorder %s27, 0
      %p267 = por %p265, %p266
      %p268 = scmp.ne.s32.totalorder %s257, %s260
      %p269 = scmp.eq.s32.totalorder %s32, 1
      %p270 = por %p268, %p269
      %p271 = scmp.ne.s32.totalorder %s260, %s261
      %p272 = scmp.eq.s32.totalorder %s32, 0
      %p273 = por %p271, %p272
      %p274 = scmp.ne.s32.totalorder %s260, %s261
      %p275 = scmp.eq.s32.totalorder %s33, 1
      %p276 = por %p274, %p275
      %p278 = scmp.ne.s32.totalorder %s261, %s277
      %p279 = scmp.eq.s32.totalorder %s33, 0
      %p280 = por %p278, %p279
      %p281 = scmp.le.s32.totalorder 1, %s27
      %p282 = scmp.lt.s32.totalorder %s27, 3
      %p283 = pnand %p281, %p282
      %p284 = pneg %p283
      // Predicated region
      $region9: #{tpu_custom_call.1} parent=5 // pred_check
        _
      $region10: #{tpu_custom_call.1} parent=5 // pred_check_branch
        %286 = sbr.rel (%p283) target = $region12
      $region11: #{tpu_custom_call.1} parent=5 // pred_region
        %s287 = ssub.s32 %s27, 1
        // Predicated region
        $region13: #{tpu_custom_call.1} parent=11 // pred_check
          %p288 = pneg %p100
        $region14: #{tpu_custom_call.1} parent=11 // pred_check_branch
          %290 = sbr.rel (%p288) target = $region16
        $region15: #{tpu_custom_call.1} parent=11 // pred_region
          %s292 = ssub.s32 256, 256
          %293 = vsyncadd [#allocation10], %s292
          %s294 = sshll.u32 [#allocation11], 4
          %s295 = int_to_ptr.vmem [resolvable:$true] %s294
          %300 = dma.hbm_to_vmem [thread:$0]  %s2, 256, %s295, [#allocation10], 64, 64, 4
        $region16: #{tpu_custom_call.1} parent=11 // pred_fallthru
          _
        // Predicated region
        $region17: #{tpu_custom_call.1} parent=11 // pred_check
          %p301 = pneg %p121
        $region18: #{tpu_custom_call.1} parent=11 // pred_check_branch
          %303 = sbr.rel (%p301) target = $region20
        $region19: #{tpu_custom_call.1} parent=11 // pred_region
          %s305 = ssub.s32 256, 256
          %306 = vsyncadd [#allocation13], %s305
          %s307 = sshll.u32 [#allocation12], 4
          %s308 = int_to_ptr.vmem [resolvable:$true] %s307
          %313 = dma.hbm_to_vmem [thread:$0]  %s3, 256, %s308, [#allocation13], 64, 64, 4
        $region20: #{tpu_custom_call.1} parent=11 // pred_fallthru
          _
        // Predicated region
        $region21: #{tpu_custom_call.1} parent=11 // pred_check
          %p314 = pneg %p142
        $region22: #{tpu_custom_call.1} parent=11 // pred_check_branch
          %316 = sbr.rel (%p314) target = $region24
        $region23: #{tpu_custom_call.1} parent=11 // pred_region
          %s318 = ssub.s32 256, 256
          %319 = vsyncadd [#allocation13], %s318
          %s320 = sshll.u32 [#allocation14], 4
          %s321 = int_to_ptr.vmem [resolvable:$true] %s320
          %326 = dma.hbm_to_vmem [thread:$0]  %s4, 256, %s321, [#allocation13], 64, 64, 4
        $region24: #{tpu_custom_call.1} parent=11 // pred_fallthru
          _
        // Predicated region
        $region25: #{tpu_custom_call.1} parent=11 // pred_check
          %p327 = pneg %p163
        $region26: #{tpu_custom_call.1} parent=11 // pred_check_branch
          %329 = sbr.rel (%p327) target = $region28
        $region27: #{tpu_custom_call.1} parent=11 // pred_region
          %s331 = ssub.s32 256, 256
          %332 = vsyncadd [#allocation16], %s331
          %s333 = sshll.u32 [#allocation15], 4
          %s334 = int_to_ptr.vmem [resolvable:$true] %s333
          %339 = dma.hbm_to_vmem [thread:$0]  %s5, 256, %s334, [#allocation16], 64, 64, 4
        $region28: #{tpu_custom_call.1} parent=11 // pred_fallthru
          _
        // Predicated region
        $region29: #{tpu_custom_call.1} parent=11 // pred_check
          %p340 = pneg %p184
        $region30: #{tpu_custom_call.1} parent=11 // pred_check_branch
          %342 = sbr.rel (%p340) target = $region32
        $region31: #{tpu_custom_call.1} parent=11 // pred_region
          _
        $region32: #{tpu_custom_call.1} parent=11 // pred_fallthru
          _
        // Predicated region
        $region33: #{tpu_custom_call.1} parent=11 // pred_check
          %p343 = pneg %p205
        $region34: #{tpu_custom_call.1} parent=11 // pred_check_branch
          %345 = sbr.rel (%p343) target = $region36
        $region35: #{tpu_custom_call.1} parent=11 // pred_region
          _
        $region36: #{tpu_custom_call.1} parent=11 // pred_fallthru
          _
        // Predicated region
        $region37: #{tpu_custom_call.1} parent=11 // pred_check
          %p346 = pneg %p226
        $region38: #{tpu_custom_call.1} parent=11 // pred_check_branch
          %348 = sbr.rel (%p346) target = $region40
        $region39: #{tpu_custom_call.1} parent=11 // pred_region
          _
        $region40: #{tpu_custom_call.1} parent=11 // pred_fallthru
          _
        // Predicated region
        $region41: #{tpu_custom_call.1} parent=11 // pred_check
          %p349 = pneg %p247
        $region42: #{tpu_custom_call.1} parent=11 // pred_check_branch
          %351 = sbr.rel (%p349) target = $region44
        $region43: #{tpu_custom_call.1} parent=11 // pred_region
          _
        $region44: #{tpu_custom_call.1} parent=11 // pred_fallthru
          _
      $region12: #{tpu_custom_call.1} parent=5 // pred_fallthru
        _
      %p352 = scmp.lt.s32.totalorder %s27, 2
      // Predicated region
      $region45: #{tpu_custom_call.1} parent=5 // pred_check
        %p353 = pneg %p352
      $region46: #{tpu_custom_call.1} parent=5 // pred_check_branch
        %355 = sbr.rel (%p353) target = $region48
      $region47: #{tpu_custom_call.1} parent=5 // pred_region
        // Predicated region
        $region49: #{tpu_custom_call.1} parent=47 // pred_check
          %p356 = pneg %p47
        $region50: #{tpu_custom_call.1} parent=47 // pred_check_branch
          %358 = sbr.rel (%p356) target = $region52
        $region51: #{tpu_custom_call.1} parent=47 // pred_region
          %s359 = sand.u32 %s37, 1
          %s360 = scalar_lea.sflag [#allocation7], %s359
          %s361 = sand.u32 %s37, 1
          %s362 = smul.addr %s361, 4
          %s363 = scalar_lea.vmem [#allocation6], %s362
          %s365 = ssub.s32 64, 64
          %366 = vsyncadd %s360, %s365
          %s367 = smul.addr %s27, 64
          %s368 = scalar_lea.hbm %s0, %s367
          %s370 = sshll.u32 %s363, 4
          %s371 = int_to_ptr.vmem [resolvable:$true] %s370
          %373 = dma.hbm_to_vmem [thread:$0]  %s368, 64, %s371, %s360
        $region52: #{tpu_custom_call.1} parent=47 // pred_fallthru
          _
        // Predicated region
        $region53: #{tpu_custom_call.1} parent=47 // pred_check
          %p374 = pneg %p73
        $region54: #{tpu_custom_call.1} parent=47 // pred_check_branch
          %376 = sbr.rel (%p374) target = $region56
        $region55: #{tpu_custom_call.1} parent=47 // pred_region
          %s377 = sand.u32 %s27, 1
          %s378 = scalar_lea.sflag [#allocation10], %s377
          %s379 = sand.u32 %s63, 1
          %s380 = smul.addr %s379, 8
          %s381 = scalar_lea.vmem [#allocation9], %s380
          %s382 = smul.u32 2, %s27
          %s384 = ssub.s32 128, 128
          %385 = vsyncadd %s378, %s384
          %s386 = smul.addr %s382, 64
          %s387 = scalar_lea.hbm %s1, %s386
          %s388 = sshll.u32 %s381, 4
          %s389 = int_to_ptr.vmem [resolvable:$true] %s388
          %394 = dma.hbm_to_vmem [thread:$0]  %s387, 128, %s389, %s378, 64, 64, 4
        $region56: #{tpu_custom_call.1} parent=47 // pred_fallthru
          _
      $region48: #{tpu_custom_call.1} parent=5 // pred_fallthru
        _
      %p395 = scmp.le.s32.totalorder 1, %s27
      %p396 = scmp.lt.s32.totalorder %s27, 3
      %p397 = pnand %p395, %p396
      %p398 = pneg %p397
      // Predicated region
      $region57: #{tpu_custom_call.1} parent=5 // pred_check
        _
      $region58: #{tpu_custom_call.1} parent=5 // pred_check_branch
        %400 = sbr.rel (%p397) target = $region60
      $region59: #{tpu_custom_call.1} parent=5 // pred_region
        %s401 = ssub.s32 %s27, 1
        %s402 = sand.u32 %s40, 1
        %s403 = scalar_lea.sflag [#allocation7], %s402
        %s404 = sand.u32 %s40, 1
        %s405 = smul.addr %s404, 4
        %s406 = scalar_lea.vmem [#allocation6], %s405
        // Predicated region
        $region61: #{tpu_custom_call.1} parent=59 // pred_check
          %p407 = pneg %p53
        $region62: #{tpu_custom_call.1} parent=59 // pred_check_branch
          %409 = sbr.rel (%p407) target = $region64
        $region63: #{tpu_custom_call.1} parent=59 // pred_region
          %410 = dma.done %s403, 64
        $region64: #{tpu_custom_call.1} parent=59 // pred_fallthru
          _
        %s411 = sand.u32 %s32, 1
        %s412 = scalar_lea.sflag [#allocation10], %s411
        %s413 = sand.u32 %s66, 1
        %s414 = smul.addr %s413, 8
        %s415 = scalar_lea.vmem [#allocation9], %s414
        // Predicated region
        $region65: #{tpu_custom_call.1} parent=59 // pred_check
          %p416 = pneg %p79
        $region66: #{tpu_custom_call.1} parent=59 // pred_check_branch
          %418 = sbr.rel (%p416) target = $region68
        $region67: #{tpu_custom_call.1} parent=59 // pred_region
          %419 = dma.done %s412, 128
        $region68: #{tpu_custom_call.1} parent=59 // pred_fallthru
          _
        // Predicated region
        $region69: #{tpu_custom_call.1} parent=59 // pred_check
          %p420 = pneg %p100
        $region70: #{tpu_custom_call.1} parent=59 // pred_check_branch
          %422 = sbr.rel (%p420) target = $region72
        $region71: #{tpu_custom_call.1} parent=59 // pred_region
          %423 = dma.done [#allocation10], 256
        $region72: #{tpu_custom_call.1} parent=59 // pred_fallthru
          _
        // Predicated region
        $region73: #{tpu_custom_call.1} parent=59 // pred_check
          %p424 = pneg %p121
        $region74: #{tpu_custom_call.1} parent=59 // pred_check_branch
          %426 = sbr.rel (%p424) target = $region76
        $region75: #{tpu_custom_call.1} parent=59 // pred_region
          %427 = dma.done [#allocation13], 256
        $region76: #{tpu_custom_call.1} parent=59 // pred_fallthru
          _
        // Predicated region
        $region77: #{tpu_custom_call.1} parent=59 // pred_check
          %p428 = pneg %p142
        $region78: #{tpu_custom_call.1} parent=59 // pred_check_branch
          %430 = sbr.rel (%p428) target = $region80
        $region79: #{tpu_custom_call.1} parent=59 // pred_region
          %431 = dma.done [#allocation13], 256
        $region80: #{tpu_custom_call.1} parent=59 // pred_fallthru
          _
        // Predicated region
        $region81: #{tpu_custom_call.1} parent=59 // pred_check
          %p432 = pneg %p163
        $region82: #{tpu_custom_call.1} parent=59 // pred_check_branch
          %434 = sbr.rel (%p432) target = $region84
        $region83: #{tpu_custom_call.1} parent=59 // pred_region
          %435 = dma.done [#allocation16], 256
        $region84: #{tpu_custom_call.1} parent=59 // pred_fallthru
          _
        %s436 = sand.u32 %s40, 1
        %s437 = scalar_lea.sflag [#allocation7], %s436
        %s438 = sand.u32 %s40, 1
        %s439 = smul.addr %s438, 4
        %s440 = scalar_lea.vmem [#allocation6], %s439
        %p441 = pneg %p53
        %p442 = pneg %p50
        %s443 = sand.u32 %s32, 1
        %s444 = scalar_lea.sflag [#allocation10], %s443
        %s445 = sand.u32 %s66, 1
        %s446 = smul.addr %s445, 8
        %s447 = scalar_lea.vmem [#allocation9], %s446
        %p448 = pneg %p79
        %p449 = pneg %p76
        %p450 = pneg %p100
        %p451 = pneg %p97
        %p452 = pneg %p121
        %p453 = pneg %p118
        %p454 = pneg %p142
        %p455 = pneg %p139
        %p456 = pneg %p163
        %p457 = pneg %p160
        %p458 = pneg %p184
        %p459 = pneg %p181
        %p460 = pneg %p205
        %p461 = pneg %p202
        %p462 = pneg %p226
        %p463 = pneg %p223
        %p464 = pneg %p247
        %p465 = pneg %p244
        %p466 = pneg %p273
        %p467 = pneg %p270
        %s468 = sand.u32 %s260, 1
        %s469 = scalar_lea.sflag [#allocation8], %s468
        %s470 = sand.u32 %s260, 1
        %s471 = smul.addr %s470, 8
        %s472 = scalar_lea.vmem [#allocation17], %s471
        %s473 = smul.u32 2, %s32
        %v475 = vld [vmem:[%s406] sm:$0xf]
        %v476 = vld [vmem:[%s415] sm:$0xf]
        %v477 = vld [vmem:[%s415 + $0x4] sm:$0xf]
        %v478 = vld [vmem:[#allocation11] sm:$0xf]
        %v479 = vld [vmem:[#allocation11 + $0x4] sm:$0xf]
        %v480 = vld [vmem:[#allocation11 + $0x8] sm:$0xf]
        %v481 = vld [vmem:[#allocation11 + $0xc] sm:$0xf]
        %v482 = vld [vmem:[%s6] sm:$0x1]
        %v484 = vlaneseq
        %v485 = vshrl.u32 %v484, 7
        %v486 = vsub.s32 0, %v485
        %v487 = vrot.slane %v482, %v486
        %v493 = vunpack.c.l.b16 %v478
        %v494 = vunpack.c.l.b16 %v479
        %v495 = vunpack.c.l.b16 %v480
        %v496 = vunpack.c.l.b16 %v481
        %v497 = vpack.c.b16 %v494, %v493
        %v498 = vpack.c.b16 %v496, %v495
        %vm501 = vcmask 261120
        %v503 = vsel %vm501, %v475, 0
        %505 = vmatprep.subr.bf16.mxu0 0
        %506 = vmatpush1.bf16.msra.mxu0 0
        %507 = vmatprep.subr.bf16.mxu0 0
        %508 = vmatpush1.bf16.msra.mxu0 0
        %509 = vmatprep.subr.bf16.mxu0 0
        %510 = vmatpush1.bf16.msra.mxu0 0
        %511 = vmatprep.subr.bf16.mxu0 0
        %512 = vmatpush1.bf16.msra.mxu0 0
        %513 = vmatprep.subr.bf16.mxu0 0
        %514 = vmatpush1.bf16.msra.mxu0 0
        %515 = vmatprep.subr.bf16.mxu0 0
        %516 = vmatpush1.bf16.msra.mxu0 0
        %517 = vmatprep.subr.bf16.mxu0 0
        %518 = vmatpush1.bf16.msra.mxu0 %v498
        %519 = vmatprep.subr.bf16.mxu0 0
        %520 = vmatpush1.bf16.msra.mxu0 %v497
        %521 = vmatprep.subr.bf16.mxu0 0
        %522 = vmatpush2.bf16.msra.mxu0 0
        %523 = vmatprep.subr.bf16.mxu0 0
        %524 = vmatpush2.bf16.msra.mxu0 0
        %525 = vmatprep.subr.bf16.mxu0 0
        %526 = vmatpush2.bf16.msra.mxu0 0
        %527 = vmatprep.subr.bf16.mxu0 0
        %528 = vmatpush2.bf16.msra.mxu0 0
        %529 = vmatprep.subr.bf16.mxu0 0
        %530 = vmatpush2.bf16.msra.mxu0 0
        %531 = vmatprep.subr.bf16.mxu0 0
        %532 = vmatpush2.bf16.msra.mxu0 0
        %533 = vmatprep.subr.bf16.mxu0 0
        %534 = vmatpush2.bf16.msra.mxu0 0
        %535 = vmatprep.subr.bf16.mxu0 0
        %536 = vmatpush2.bf16.msra.mxu0 0
        %537 = vmatprep.mubr.bf16.mxu0 0
        %538 = vmatmul.mubr.bf16.gmra.mxu0 %v503
        %v539 = vpop.f32.mrf.mxu0
        %v540 = vadd.f32 %v487, %v539
        %v541 = vpop.f32.mrf.mxu0
        %v542 = vpop.f32.mrf.mxu0
        %v543 = vpop.f32.mrf.mxu0
        %544 = vdwg.mxu0
        %545 = vst.msk [vmem:[#allocation2] sm:$0xff] %vm501, %v540
        %v546 = vld [vmem:[#allocation12] sm:$0xf]
        %v547 = vld [vmem:[#allocation12 + $0x4] sm:$0xf]
        %v548 = vld [vmem:[#allocation12 + $0x8] sm:$0xf]
        %v549 = vld [vmem:[#allocation12 + $0xc] sm:$0xf]
        %v550 = vld [vmem:[%s7] sm:$0x1]
        %v552 = vlaneseq
        %v553 = vshrl.u32 %v552, 7
        %v554 = vsub.s32 0, %v553
        %v555 = vrot.slane %v550, %v554
        %v559 = vunpack.c.l.b16 %v476
        %v560 = vunpack.c.l.b16 %v477
        %v561 = vpack.c.b16 %v560, %v559
        %v566 = vunpack.c.l.b16 %v546
        %v567 = vunpack.c.l.b16 %v547
        %v568 = vunpack.c.l.b16 %v548
        %v569 = vunpack.c.l.b16 %v549
        %v570 = vpack.c.b16 %v567, %v566
        %v571 = vpack.c.b16 %v569, %v568
        %v575 = vsel %vm501, %v561, 0
        %577 = vmatprep.subr.bf16.mxu0 0
        %578 = vmatpush1.bf16.msra.mxu0 0
        %579 = vmatprep.subr.bf16.mxu0 0
        %580 = vmatpush1.bf16.msra.mxu0 0
        %581 = vmatprep.subr.bf16.mxu0 0
        %582 = vmatpush1.bf16.msra.mxu0 0
        %583 = vmatprep.subr.bf16.mxu0 0
        %584 = vmatpush1.bf16.msra.mxu0 0
        %585 = vmatprep.subr.bf16.mxu0 0
        %586 = vmatpush1.bf16.msra.mxu0 0
        %587 = vmatprep.subr.bf16.mxu0 0
        %588 = vmatpush1.bf16.msra.mxu0 0
        %589 = vmatprep.subr.bf16.mxu0 0
        %590 = vmatpush1.bf16.msra.mxu0 %v571
        %591 = vmatprep.subr.bf16.mxu0 0
        %592 = vmatpush1.bf16.msra.mxu0 %v570
        %593 = vmatprep.subr.bf16.mxu0 0
        %594 = vmatpush2.bf16.msra.mxu0 0
        %595 = vmatprep.subr.bf16.mxu0 0
        %596 = vmatpush2.bf16.msra.mxu0 0
        %597 = vmatprep.subr.bf16.mxu0 0
        %598 = vmatpush2.bf16.msra.mxu0 0
        %599 = vmatprep.subr.bf16.mxu0 0
        %600 = vmatpush2.bf16.msra.mxu0 0
        %601 = vmatprep.subr.bf16.mxu0 0
        %602 = vmatpush2.bf16.msra.mxu0 0
        %603 = vmatprep.subr.bf16.mxu0 0
        %604 = vmatpush2.bf16.msra.mxu0 0
        %605 = vmatprep.subr.bf16.mxu0 0
        %606 = vmatpush2.bf16.msra.mxu0 0
        %607 = vmatprep.subr.bf16.mxu0 0
        %608 = vmatpush2.bf16.msra.mxu0 0
        %609 = vmatprep.mubr.bf16.mxu0 0
        %610 = vmatmul.mubr.bf16.gmra.mxu0 %v575
        %v611 = vpop.f32.mrf.mxu0
        %v612 = vadd.f32 %v555, %v611
        %v613 = vpop.f32.mrf.mxu0
        %v614 = vpop.f32.mrf.mxu0
        %v615 = vadd.f32 %v555, %v614
        %v616 = vpop.f32.mrf.mxu0
        %617 = vdwg.mxu0
        %618 = vst.msk [vmem:[#allocation3] sm:$0xff] %vm501, %v612
        %619 = vst.msk [vmem:[#allocation3 + $0x8] sm:$0xff] %vm501, %v615
        %v620 = vld [vmem:[#allocation14] sm:$0xf]
        %v621 = vld [vmem:[#allocation14 + $0x4] sm:$0xf]
        %v622 = vld [vmem:[#allocation14 + $0x8] sm:$0xf]
        %v623 = vld [vmem:[#allocation14 + $0xc] sm:$0xf]
        %v624 = vld [vmem:[%s8] sm:$0x1]
        %v626 = vlaneseq
        %v627 = vshrl.u32 %v626, 7
        %v628 = vsub.s32 0, %v627
        %v629 = vrot.slane %v624, %v628
        %v635 = vunpack.c.l.b16 %v620
        %v636 = vunpack.c.l.b16 %v621
        %v637 = vunpack.c.l.b16 %v622
        %v638 = vunpack.c.l.b16 %v623
        %v639 = vpack.c.b16 %v636, %v635
        %v640 = vpack.c.b16 %v638, %v637
        %643 = vmatprep.subr.bf16.mxu0 0
        %644 = vmatpush1.bf16.msra.mxu0 0
        %645 = vmatprep.subr.bf16.mxu0 0
        %646 = vmatpush1.bf16.msra.mxu0 0
        %647 = vmatprep.subr.bf16.mxu0 0
        %648 = vmatpush1.bf16.msra.mxu0 0
        %649 = vmatprep.subr.bf16.mxu0 0
        %650 = vmatpush1.bf16.msra.mxu0 0
        %651 = vmatprep.subr.bf16.mxu0 0
        %652 = vmatpush1.bf16.msra.mxu0 0
        %653 = vmatprep.subr.bf16.mxu0 0
        %654 = vmatpush1.bf16.msra.mxu0 0
        %655 = vmatprep.subr.bf16.mxu0 0
        %656 = vmatpush1.bf16.msra.mxu0 %v640
        %657 = vmatprep.subr.bf16.mxu0 0
        %658 = vmatpush1.bf16.msra.mxu0 %v639
        %659 = vmatprep.subr.bf16.mxu0 0
        %660 = vmatpush2.bf16.msra.mxu0 0
        %661 = vmatprep.subr.bf16.mxu0 0
        %662 = vmatpush2.bf16.msra.mxu0 0
        %663 = vmatprep.subr.bf16.mxu0 0
        %664 = vmatpush2.bf16.msra.mxu0 0
        %665 = vmatprep.subr.bf16.mxu0 0
        %666 = vmatpush2.bf16.msra.mxu0 0
        %667 = vmatprep.subr.bf16.mxu0 0
        %668 = vmatpush2.bf16.msra.mxu0 0
        %669 = vmatprep.subr.bf16.mxu0 0
        %670 = vmatpush2.bf16.msra.mxu0 0
        %671 = vmatprep.subr.bf16.mxu0 0
        %672 = vmatpush2.bf16.msra.mxu0 0
        %673 = vmatprep.subr.bf16.mxu0 0
        %674 = vmatpush2.bf16.msra.mxu0 0
        %675 = vmatprep.mubr.bf16.mxu0 0
        %676 = vmatmul.mubr.bf16.gmra.mxu0 %v575
        %v677 = vpop.f32.mrf.mxu0
        %v678 = vadd.f32 %v629, %v677
        %v679 = vpop.f32.mrf.mxu0
        %v680 = vpop.f32.mrf.mxu0
        %v681 = vadd.f32 %v629, %v680
        %v682 = vpop.f32.mrf.mxu0
        %683 = vdwg.mxu0
        %684 = vst.msk [vmem:[#allocation4] sm:$0xff] %vm501, %v678
        %685 = vst.msk [vmem:[#allocation4 + $0x8] sm:$0xff] %vm501, %v681
        %v686 = vld [vmem:[#allocation2] sm:$0xff]
        %v687 = vld [vmem:[#allocation3] sm:$0xff]
        %v688 = vld [vmem:[#allocation3 + $0x8] sm:$0xff]
        %v689 = vld [vmem:[#allocation4] sm:$0xff]
        %v690 = vld [vmem:[#allocation4 + $0x8] sm:$0xff]
        %vm691 = vcmask 64512
        %v693 = vsel %vm691, %v686, 0
        %v696 = vsel %vm691, %v687, 0
        %v699 = vsel %vm691, %v688, 0
        %701 = vmatprep.subr.mxu0 0.0
        %702 = vmatpush1.xpose.msra.mxu0 0.0
        %703 = vmatprep.subr.mxu0 0.0
        %704 = vmatpush1.xpose.msra.mxu0 0.0
        %705 = vmatprep.subr.mxu0 0.0
        %706 = vmatpush1.xpose.msra.mxu0 0.0
        %707 = vmatprep.subr.mxu0 0.0
        %708 = vmatpush1.xpose.msra.mxu0 0.0
        %709 = vmatprep.subr.mxu0 0.0
        %710 = vmatpush1.xpose.msra.mxu0 0.0
        %711 = vmatprep.subr.mxu0 0.0
        %712 = vmatpush1.xpose.msra.mxu0 0.0
        %713 = vmatprep.subr.mxu0 0.0
        %714 = vmatpush1.xpose.msra.mxu0 0.0
        %715 = vmatprep.subr.mxu0 0.0
        %716 = vmatpush1.xpose.msra.mxu0 0.0
        %717 = vmatprep.subr.mxu0 0.0
        %718 = vmatpush1.xpose.msra.mxu0 0.0
        %719 = vmatprep.subr.mxu0 0.0
        %720 = vmatpush1.xpose.msra.mxu0 0.0
        %721 = vmatprep.subr.mxu0 0.0
        %722 = vmatpush1.xpose.msra.mxu0 0.0
        %723 = vmatprep.subr.mxu0 0.0
        %724 = vmatpush1.xpose.msra.mxu0 0.0
        %725 = vmatprep.subr.mxu0 0.0
        %726 = vmatpush1.xpose.msra.mxu0 0.0
        %727 = vmatprep.subr.mxu0 0.0
        %728 = vmatpush1.xpose.msra.mxu0 0.0
        %729 = vmatprep.subr.mxu0 0.0
        %730 = vmatpush1.xpose.msra.mxu0 %v699
        %731 = vmatprep.subr.mxu0 0.0
        %732 = vmatpush1.xpose.msra.mxu0 %v696
        %733 = vmatprep.subr.mxu0 0.0
        %734 = vmatpush2.xpose.msra.mxu0 0.0
        %735 = vmatprep.subr.mxu0 0.0
        %736 = vmatpush2.xpose.msra.mxu0 0.0
        %737 = vmatprep.subr.mxu0 0.0
        %738 = vmatpush2.xpose.msra.mxu0 0.0
        %739 = vmatprep.subr.mxu0 0.0
        %740 = vmatpush2.xpose.msra.mxu0 0.0
        %741 = vmatprep.subr.mxu0 0.0
        %742 = vmatpush2.xpose.msra.mxu0 0.0
        %743 = vmatprep.subr.mxu0 0.0
        %744 = vmatpush2.xpose.msra.mxu0 0.0
        %745 = vmatprep.subr.mxu0 0.0
        %746 = vmatpush2.xpose.msra.mxu0 0.0
        %747 = vmatprep.subr.mxu0 0.0
        %748 = vmatpush2.xpose.msra.mxu0 0.0
        %749 = vmatprep.subr.mxu0 0.0
        %750 = vmatpush2.xpose.msra.mxu0 0.0
        %751 = vmatprep.subr.mxu0 0.0
        %752 = vmatpush2.xpose.msra.mxu0 0.0
        %753 = vmatprep.subr.mxu0 0.0
        %754 = vmatpush2.xpose.msra.mxu0 0.0
        %755 = vmatprep.subr.mxu0 0.0
        %756 = vmatpush2.xpose.msra.mxu0 0.0
        %757 = vmatprep.subr.mxu0 0.0
        %758 = vmatpush2.xpose.msra.mxu0 0.0
        %759 = vmatprep.subr.mxu0 0.0
        %760 = vmatpush2.xpose.msra.mxu0 0.0
        %761 = vmatprep.subr.mxu0 0.0
        %762 = vmatpush2.xpose.msra.mxu0 0.0
        %763 = vmatprep.subr.mxu0 0.0
        %764 = vmatpush2.xpose.msra.mxu0 0.0
        %765 = vmatprep.mubr.f32.mxu0 0.0
        %766 = vmatmul.mubr.f32.gmra.mxu0 %v693
        %v767 = vpop.f32.mrf.mxu0
        %v768 = vadd.f32 0.0, %v767
        %v769 = vpop.f32.mrf.mxu0
        %770 = vdwg.mxu0
        %vm771 = vcmask 130048
        %v772 = vsel %vm771, %v768, -inf
        %773 = vmax.xlane.f32.xlu0 %v772
        %v774 = vpop.xlane.xlu0 %773
        %v775 = vsub.f32 %v768, %v774
        %v776 = vmul.f32 %v775, 1.442695
        %v777 = vpow.pop %v776
        %v778 = vsel %vm771, %v777, 0.0
        %779 = vadd.xlane.f32.xlu0 %v778
        %v780 = vpop.xlane.xlu0 %779
        %v781 = vrcp.pop %v780
        %v782 = vmul.f32 %v777, %v781
        %v784 = vsel %vm771, %v782, 0
        %786 = vmatprep.subr.mxu0 0.0
        %787 = vmatpush1.msra.mxu0 0.0
        %788 = vmatprep.subr.mxu0 0.0
        %789 = vmatpush1.msra.mxu0 0.0
        %790 = vmatprep.subr.mxu0 0.0
        %791 = vmatpush1.msra.mxu0 0.0
        %792 = vmatprep.subr.mxu0 0.0
        %793 = vmatpush1.msra.mxu0 0.0
        %794 = vmatprep.subr.mxu0 0.0
        %795 = vmatpush1.msra.mxu0 0.0
        %796 = vmatprep.subr.mxu0 0.0
        %797 = vmatpush1.msra.mxu0 0.0
        %798 = vmatprep.subr.mxu0 0.0
        %799 = vmatpush1.msra.mxu0 0.0
        %800 = vmatprep.subr.mxu0 0.0
        %801 = vmatpush1.msra.mxu0 0.0
        %802 = vmatprep.subr.mxu0 0.0
        %803 = vmatpush1.msra.mxu0 0.0
        %804 = vmatprep.subr.mxu0 0.0
        %805 = vmatpush1.msra.mxu0 0.0
        %806 = vmatprep.subr.mxu0 0.0
        %807 = vmatpush1.msra.mxu0 0.0
        %808 = vmatprep.subr.mxu0 0.0
        %809 = vmatpush1.msra.mxu0 0.0
        %810 = vmatprep.subr.mxu0 0.0
        %811 = vmatpush1.msra.mxu0 0.0
        %812 = vmatprep.subr.mxu0 0.0
        %813 = vmatpush1.msra.mxu0 0.0
        %814 = vmatprep.subr.mxu0 0.0
        %815 = vmatpush1.msra.mxu0 %v690
        %816 = vmatprep.subr.mxu0 0.0
        %817 = vmatpush1.msra.mxu0 %v689
        %818 = vmatprep.subr.mxu0 0.0
        %819 = vmatpush2.msra.mxu0 0.0
        %820 = vmatprep.subr.mxu0 0.0
        %821 = vmatpush2.msra.mxu0 0.0
        %822 = vmatprep.subr.mxu0 0.0
        %823 = vmatpush2.msra.mxu0 0.0
        %824 = vmatprep.subr.mxu0 0.0
        %825 = vmatpush2.msra.mxu0 0.0
        %826 = vmatprep.subr.mxu0 0.0
        %827 = vmatpush2.msra.mxu0 0.0
        %828 = vmatprep.subr.mxu0 0.0
        %829 = vmatpush2.msra.mxu0 0.0
        %830 = vmatprep.subr.mxu0 0.0
        %831 = vmatpush2.msra.mxu0 0.0
        %832 = vmatprep.subr.mxu0 0.0
        %833 = vmatpush2.msra.mxu0 0.0
        %834 = vmatprep.subr.mxu0 0.0
        %835 = vmatpush2.msra.mxu0 0.0
        %836 = vmatprep.subr.mxu0 0.0
        %837 = vmatpush2.msra.mxu0 0.0
        %838 = vmatprep.subr.mxu0 0.0
        %839 = vmatpush2.msra.mxu0 0.0
        %840 = vmatprep.subr.mxu0 0.0
        %841 = vmatpush2.msra.mxu0 0.0
        %842 = vmatprep.subr.mxu0 0.0
        %843 = vmatpush2.msra.mxu0 0.0
        %844 = vmatprep.subr.mxu0 0.0
        %845 = vmatpush2.msra.mxu0 0.0
        %846 = vmatprep.subr.mxu0 0.0
        %847 = vmatpush2.msra.mxu0 0.0
        %848 = vmatprep.subr.mxu0 0.0
        %849 = vmatpush2.msra.mxu0 0.0
        %850 = vmatprep.mubr.f32.mxu0 0.0
        %851 = vmatmul.mubr.f32.gmra.mxu0 %v784
        %v852 = vpop.f32.mrf.mxu0
        %v853 = vadd.f32 0.0, %v852
        %v854 = vpop.f32.mrf.mxu0
        %855 = vdwg.mxu0
        %856 = vst.msk [vmem:[#allocation5] sm:$0xff] %vm691, %v853
        %v857 = vld [vmem:[#allocation2] sm:$0xff]
        %v858 = vld [vmem:[#allocation3] sm:$0xff]
        %v859 = vld [vmem:[#allocation3 + $0x8] sm:$0xff]
        %v860 = vld [vmem:[#allocation4] sm:$0xff]
        %v861 = vld [vmem:[#allocation4 + $0x8] sm:$0xff]
        %863 = vrot.lane.b32.xlu0 %v857, 120
        %v864 = vpop.permute.xlu0 %863
        %867 = vrot.lane.b32.xlu0 %v858, 120
        %v868 = vpop.permute.xlu0 %867
        %869 = vrot.lane.b32.xlu0 %v859, 120
        %v870 = vpop.permute.xlu0 %869
        %v871 = vsel %vm691, %v864, 0
        %v873 = vsel %vm691, %v868, 0
        %v875 = vsel %vm691, %v870, 0
        %877 = vmatprep.subr.mxu0 0.0
        %878 = vmatpush1.xpose.msra.mxu0 0.0
        %879 = vmatprep.subr.mxu0 0.0
        %880 = vmatpush1.xpose.msra.mxu0 0.0
        %881 = vmatprep.subr.mxu0 0.0
        %882 = vmatpush1.xpose.msra.mxu0 0.0
        %883 = vmatprep.subr.mxu0 0.0
        %884 = vmatpush1.xpose.msra.mxu0 0.0
        %885 = vmatprep.subr.mxu0 0.0
        %886 = vmatpush1.xpose.msra.mxu0 0.0
        %887 = vmatprep.subr.mxu0 0.0
        %888 = vmatpush1.xpose.msra.mxu0 0.0
        %889 = vmatprep.subr.mxu0 0.0
        %890 = vmatpush1.xpose.msra.mxu0 0.0
        %891 = vmatprep.subr.mxu0 0.0
        %892 = vmatpush1.xpose.msra.mxu0 0.0
        %893 = vmatprep.subr.mxu0 0.0
        %894 = vmatpush1.xpose.msra.mxu0 0.0
        %895 = vmatprep.subr.mxu0 0.0
        %896 = vmatpush1.xpose.msra.mxu0 0.0
        %897 = vmatprep.subr.mxu0 0.0
        %898 = vmatpush1.xpose.msra.mxu0 0.0
        %899 = vmatprep.subr.mxu0 0.0
        %900 = vmatpush1.xpose.msra.mxu0 0.0
        %901 = vmatprep.subr.mxu0 0.0
        %902 = vmatpush1.xpose.msra.mxu0 0.0
        %903 = vmatprep.subr.mxu0 0.0
        %904 = vmatpush1.xpose.msra.mxu0 0.0
        %905 = vmatprep.subr.mxu0 0.0
        %906 = vmatpush1.xpose.msra.mxu0 %v875
        %907 = vmatprep.subr.mxu0 0.0
        %908 = vmatpush1.xpose.msra.mxu0 %v873
        %909 = vmatprep.subr.mxu0 0.0
        %910 = vmatpush2.xpose.msra.mxu0 0.0
        %911 = vmatprep.subr.mxu0 0.0
        %912 = vmatpush2.xpose.msra.mxu0 0.0
        %913 = vmatprep.subr.mxu0 0.0
        %914 = vmatpush2.xpose.msra.mxu0 0.0
        %915 = vmatprep.subr.mxu0 0.0
        %916 = vmatpush2.xpose.msra.mxu0 0.0
        %917 = vmatprep.subr.mxu0 0.0
        %918 = vmatpush2.xpose.msra.mxu0 0.0
        %919 = vmatprep.subr.mxu0 0.0
        %920 = vmatpush2.xpose.msra.mxu0 0.0
        %921 = vmatprep.subr.mxu0 0.0
        %922 = vmatpush2.xpose.msra.mxu0 0.0
        %923 = vmatprep.subr.mxu0 0.0
        %924 = vmatpush2.xpose.msra.mxu0 0.0
        %925 = vmatprep.subr.mxu0 0.0
        %926 = vmatpush2.xpose.msra.mxu0 0.0
        %927 = vmatprep.subr.mxu0 0.0
        %928 = vmatpush2.xpose.msra.mxu0 0.0
        %929 = vmatprep.subr.mxu0 0.0
        %930 = vmatpush2.xpose.msra.mxu0 0.0
        %931 = vmatprep.subr.mxu0 0.0
        %932 = vmatpush2.xpose.msra.mxu0 0.0
        %933 = vmatprep.subr.mxu0 0.0
        %934 = vmatpush2.xpose.msra.mxu0 0.0
        %935 = vmatprep.subr.mxu0 0.0
        %936 = vmatpush2.xpose.msra.mxu0 0.0
        %937 = vmatprep.subr.mxu0 0.0
        %938 = vmatpush2.xpose.msra.mxu0 0.0
        %939 = vmatprep.subr.mxu0 0.0
        %940 = vmatpush2.xpose.msra.mxu0 0.0
        %941 = vmatprep.mubr.f32.mxu0 0.0
        %942 = vmatmul.mubr.f32.gmra.mxu0 %v871
        %v943 = vpop.f32.mrf.mxu0
        %v944 = vadd.f32 0.0, %v943
        %v945 = vpop.f32.mrf.mxu0
        %946 = vdwg.mxu0
        %v947 = vsel %vm771, %v944, -inf
        %948 = vmax.xlane.f32.xlu0 %v947
        %v949 = vpop.xlane.xlu0 %948
        %v950 = vsub.f32 %v944, %v949
        %v951 = vmul.f32 %v950, 1.442695
        %v952 = vpow.pop %v951
        %v953 = vsel %vm771, %v952, 0.0
        %954 = vadd.xlane.f32.xlu0 %v953
        %v955 = vpop.xlane.xlu0 %954
        %v956 = vrcp.pop %v955
        %v957 = vmul.f32 %v952, %v956
        %960 = vrot.lane.b32.xlu0 %v860, 120
        %v961 = vpop.permute.xlu0 %960
        %962 = vrot.lane.b32.xlu0 %v861, 120
        %v963 = vpop.permute.xlu0 %962
        %v967 = vsel %vm771, %v957, 0
        %969 = vmatprep.subr.mxu0 0.0
        %970 = vmatpush1.msra.mxu0 0.0
        %971 = vmatprep.subr.mxu0 0.0
        %972 = vmatpush1.msra.mxu0 0.0
        %973 = vmatprep.subr.mxu0 0.0
        %974 = vmatpush1.msra.mxu0 0.0
        %975 = vmatprep.subr.mxu0 0.0
        %976 = vmatpush1.msra.mxu0 0.0
        %977 = vmatprep.subr.mxu0 0.0
        %978 = vmatpush1.msra.mxu0 0.0
        %979 = vmatprep.subr.mxu0 0.0
        %980 = vmatpush1.msra.mxu0 0.0
        %981 = vmatprep.subr.mxu0 0.0
        %982 = vmatpush1.msra.mxu0 0.0
        %983 = vmatprep.subr.mxu0 0.0
        %984 = vmatpush1.msra.mxu0 0.0
        %985 = vmatprep.subr.mxu0 0.0
        %986 = vmatpush1.msra.mxu0 0.0
        %987 = vmatprep.subr.mxu0 0.0
        %988 = vmatpush1.msra.mxu0 0.0
        %989 = vmatprep.subr.mxu0 0.0
        %990 = vmatpush1.msra.mxu0 0.0
        %991 = vmatprep.subr.mxu0 0.0
        %992 = vmatpush1.msra.mxu0 0.0
        %993 = vmatprep.subr.mxu0 0.0
        %994 = vmatpush1.msra.mxu0 0.0
        %995 = vmatprep.subr.mxu0 0.0
        %996 = vmatpush1.msra.mxu0 0.0
        %997 = vmatprep.subr.mxu0 0.0
        %998 = vmatpush1.msra.mxu0 %v963
        %999 = vmatprep.subr.mxu0 0.0
        %1000 = vmatpush1.msra.mxu0 %v961
        %1001 = vmatprep.subr.mxu0 0.0
        %1002 = vmatpush2.msra.mxu0 0.0
        %1003 = vmatprep.subr.mxu0 0.0
        %1004 = vmatpush2.msra.mxu0 0.0
        %1005 = vmatprep.subr.mxu0 0.0
        %1006 = vmatpush2.msra.mxu0 0.0
        %1007 = vmatprep.subr.mxu0 0.0
        %1008 = vmatpush2.msra.mxu0 0.0
        %1009 = vmatprep.subr.mxu0 0.0
        %1010 = vmatpush2.msra.mxu0 0.0
        %1011 = vmatprep.subr.mxu0 0.0
        %1012 = vmatpush2.msra.mxu0 0.0
        %1013 = vmatprep.subr.mxu0 0.0
        %1014 = vmatpush2.msra.mxu0 0.0
        %1015 = vmatprep.subr.mxu0 0.0
        %1016 = vmatpush2.msra.mxu0 0.0
        %1017 = vmatprep.subr.mxu0 0.0
        %1018 = vmatpush2.msra.mxu0 0.0
        %1019 = vmatprep.subr.mxu0 0.0
        %1020 = vmatpush2.msra.mxu0 0.0
        %1021 = vmatprep.subr.mxu0 0.0
        %1022 = vmatpush2.msra.mxu0 0.0
        %1023 = vmatprep.subr.mxu0 0.0
        %1024 = vmatpush2.msra.mxu0 0.0
        %1025 = vmatprep.subr.mxu0 0.0
        %1026 = vmatpush2.msra.mxu0 0.0
        %1027 = vmatprep.subr.mxu0 0.0
        %1028 = vmatpush2.msra.mxu0 0.0
        %1029 = vmatprep.subr.mxu0 0.0
        %1030 = vmatpush2.msra.mxu0 0.0
        %1031 = vmatprep.subr.mxu0 0.0
        %1032 = vmatpush2.msra.mxu0 0.0
        %1033 = vmatprep.mubr.f32.mxu0 0.0
        %1034 = vmatmul.mubr.f32.gmra.mxu0 %v967
        %v1035 = vpop.f32.mrf.mxu0
        %v1036 = vadd.f32 0.0, %v1035
        %v1037 = vpop.f32.mrf.mxu0
        %1038 = vdwg.mxu0
        %1040 = vrot.lane.b32.xlu0 %v1036, 8
        %v1041 = vpop.permute.xlu0 %1040
        %vm1043 = vcmask 130112
        %1044 = vst.msk [vmem:[#allocation5] sm:$0xff] %vm1043, %v1041
        %v1045 = vld [vmem:[#allocation2] sm:$0xff]
        %v1046 = vld [vmem:[#allocation3] sm:$0xff]
        %v1047 = vld [vmem:[#allocation3 + $0x8] sm:$0xff]
        %v1048 = vld [vmem:[#allocation4] sm:$0xff]
        %v1049 = vld [vmem:[#allocation4 + $0x8] sm:$0xff]
        %1051 = vrot.lane.b32.xlu0 %v1045, 112
        %v1052 = vpop.permute.xlu0 %1051
        %1055 = vrot.lane.b32.xlu0 %v1046, 112
        %v1056 = vpop.permute.xlu0 %1055
        %1057 = vrot.lane.b32.xlu0 %v1047, 112
        %v1058 = vpop.permute.xlu0 %1057
        %v1059 = vsel %vm691, %v1052, 0
        %v1061 = vsel %vm691, %v1056, 0
        %v1063 = vsel %vm691, %v1058, 0
        %1065 = vmatprep.subr.mxu0 0.0
        %1066 = vmatpush1.xpose.msra.mxu0 0.0
        %1067 = vmatprep.subr.mxu0 0.0
        %1068 = vmatpush1.xpose.msra.mxu0 0.0
        %1069 = vmatprep.subr.mxu0 0.0
        %1070 = vmatpush1.xpose.msra.mxu0 0.0
        %1071 = vmatprep.subr.mxu0 0.0
        %1072 = vmatpush1.xpose.msra.mxu0 0.0
        %1073 = vmatprep.subr.mxu0 0.0
        %1074 = vmatpush1.xpose.msra.mxu0 0.0
        %1075 = vmatprep.subr.mxu0 0.0
        %1076 = vmatpush1.xpose.msra.mxu0 0.0
        %1077 = vmatprep.subr.mxu0 0.0
        %1078 = vmatpush1.xpose.msra.mxu0 0.0
        %1079 = vmatprep.subr.mxu0 0.0
        %1080 = vmatpush1.xpose.msra.mxu0 0.0
        %1081 = vmatprep.subr.mxu0 0.0
        %1082 = vmatpush1.xpose.msra.mxu0 0.0
        %1083 = vmatprep.subr.mxu0 0.0
        %1084 = vmatpush1.xpose.msra.mxu0 0.0
        %1085 = vmatprep.subr.mxu0 0.0
        %1086 = vmatpush1.xpose.msra.mxu0 0.0
        %1087 = vmatprep.subr.mxu0 0.0
        %1088 = vmatpush1.xpose.msra.mxu0 0.0
        %1089 = vmatprep.subr.mxu0 0.0
        %1090 = vmatpush1.xpose.msra.mxu0 0.0
        %1091 = vmatprep.subr.mxu0 0.0
        %1092 = vmatpush1.xpose.msra.mxu0 0.0
        %1093 = vmatprep.subr.mxu0 0.0
        %1094 = vmatpush1.xpose.msra.mxu0 %v1063
        %1095 = vmatprep.subr.mxu0 0.0
        %1096 = vmatpush1.xpose.msra.mxu0 %v1061
        %1097 = vmatprep.subr.mxu0 0.0
        %1098 = vmatpush2.xpose.msra.mxu0 0.0
        %1099 = vmatprep.subr.mxu0 0.0
        %1100 = vmatpush2.xpose.msra.mxu0 0.0
        %1101 = vmatprep.subr.mxu0 0.0
        %1102 = vmatpush2.xpose.msra.mxu0 0.0
        %1103 = vmatprep.subr.mxu0 0.0
        %1104 = vmatpush2.xpose.msra.mxu0 0.0
        %1105 = vmatprep.subr.mxu0 0.0
        %1106 = vmatpush2.xpose.msra.mxu0 0.0
        %1107 = vmatprep.subr.mxu0 0.0
        %1108 = vmatpush2.xpose.msra.mxu0 0.0
        %1109 = vmatprep.subr.mxu0 0.0
        %1110 = vmatpush2.xpose.msra.mxu0 0.0
        %1111 = vmatprep.subr.mxu0 0.0
        %1112 = vmatpush2.xpose.msra.mxu0 0.0
        %1113 = vmatprep.subr.mxu0 0.0
        %1114 = vmatpush2.xpose.msra.mxu0 0.0
        %1115 = vmatprep.subr.mxu0 0.0
        %1116 = vmatpush2.xpose.msra.mxu0 0.0
        %1117 = vmatprep.subr.mxu0 0.0
        %1118 = vmatpush2.xpose.msra.mxu0 0.0
        %1119 = vmatprep.subr.mxu0 0.0
        %1120 = vmatpush2.xpose.msra.mxu0 0.0
        %1121 = vmatprep.subr.mxu0 0.0
        %1122 = vmatpush2.xpose.msra.mxu0 0.0
        %1123 = vmatprep.subr.mxu0 0.0
        %1124 = vmatpush2.xpose.msra.mxu0 0.0
        %1125 = vmatprep.subr.mxu0 0.0
        %1126 = vmatpush2.xpose.msra.mxu0 0.0
        %1127 = vmatprep.subr.mxu0 0.0
        %1128 = vmatpush2.xpose.msra.mxu0 0.0
        %1129 = vmatprep.mubr.f32.mxu0 0.0
        %1130 = vmatmul.mubr.f32.gmra.mxu0 %v1059
        %v1131 = vpop.f32.mrf.mxu0
        %v1132 = vadd.f32 0.0, %v1131
        %v1133 = vpop.f32.mrf.mxu0
        %1134 = vdwg.mxu0
        %v1135 = vsel %vm771, %v1132, -inf
        %1136 = vmax.xlane.f32.xlu0 %v1135
        %v1137 = vpop.xlane.xlu0 %1136
        %v1138 = vsub.f32 %v1132, %v1137
        %v1139 = vmul.f32 %v1138, 1.442695
        %v1140 = vpow.pop %v1139
        %v1141 = vsel %vm771, %v1140, 0.0
        %1142 = vadd.xlane.f32.xlu0 %v1141
        %v1143 = vpop.xlane.xlu0 %1142
        %v1144 = vrcp.pop %v1143
        %v1145 = vmul.f32 %v1140, %v1144
        %1148 = vrot.lane.b32.xlu0 %v1048, 112
        %v1149 = vpop.permute.xlu0 %1148
        %1150 = vrot.lane.b32.xlu0 %v1049, 112
        %v1151 = vpop.permute.xlu0 %1150
        %v1155 = vsel %vm771, %v1145, 0
        %1157 = vmatprep.subr.mxu0 0.0
        %1158 = vmatpush1.msra.mxu0 0.0
        %1159 = vmatprep.subr.mxu0 0.0
        %1160 = vmatpush1.msra.mxu0 0.0
        %1161 = vmatprep.subr.mxu0 0.0
        %1162 = vmatpush1.msra.mxu0 0.0
        %1163 = vmatprep.subr.mxu0 0.0
        %1164 = vmatpush1.msra.mxu0 0.0
        %1165 = vmatprep.subr.mxu0 0.0
        %1166 = vmatpush1.msra.mxu0 0.0
        %1167 = vmatprep.subr.mxu0 0.0
        %1168 = vmatpush1.msra.mxu0 0.0
        %1169 = vmatprep.subr.mxu0 0.0
        %1170 = vmatpush1.msra.mxu0 0.0
        %1171 = vmatprep.subr.mxu0 0.0
        %1172 = vmatpush1.msra.mxu0 0.0
        %1173 = vmatprep.subr.mxu0 0.0
        %1174 = vmatpush1.msra.mxu0 0.0
        %1175 = vmatprep.subr.mxu0 0.0
        %1176 = vmatpush1.msra.mxu0 0.0
        %1177 = vmatprep.subr.mxu0 0.0
        %1178 = vmatpush1.msra.mxu0 0.0
        %1179 = vmatprep.subr.mxu0 0.0
        %1180 = vmatpush1.msra.mxu0 0.0
        %1181 = vmatprep.subr.mxu0 0.0
        %1182 = vmatpush1.msra.mxu0 0.0
        %1183 = vmatprep.subr.mxu0 0.0
        %1184 = vmatpush1.msra.mxu0 0.0
        %1185 = vmatprep.subr.mxu0 0.0
        %1186 = vmatpush1.msra.mxu0 %v1151
        %1187 = vmatprep.subr.mxu0 0.0
        %1188 = vmatpush1.msra.mxu0 %v1149
        %1189 = vmatprep.subr.mxu0 0.0
        %1190 = vmatpush2.msra.mxu0 0.0
        %1191 = vmatprep.subr.mxu0 0.0
        %1192 = vmatpush2.msra.mxu0 0.0
        %1193 = vmatprep.subr.mxu0 0.0
        %1194 = vmatpush2.msra.mxu0 0.0
        %1195 = vmatprep.subr.mxu0 0.0
        %1196 = vmatpush2.msra.mxu0 0.0
        %1197 = vmatprep.subr.mxu0 0.0
        %1198 = vmatpush2.msra.mxu0 0.0
        %1199 = vmatprep.subr.mxu0 0.0
        %1200 = vmatpush2.msra.mxu0 0.0
        %1201 = vmatprep.subr.mxu0 0.0
        %1202 = vmatpush2.msra.mxu0 0.0
        %1203 = vmatprep.subr.mxu0 0.0
        %1204 = vmatpush2.msra.mxu0 0.0
        %1205 = vmatprep.subr.mxu0 0.0
        %1206 = vmatpush2.msra.mxu0 0.0
        %1207 = vmatprep.subr.mxu0 0.0
        %1208 = vmatpush2.msra.mxu0 0.0
        %1209 = vmatprep.subr.mxu0 0.0
        %1210 = vmatpush2.msra.mxu0 0.0
        %1211 = vmatprep.subr.mxu0 0.0
        %1212 = vmatpush2.msra.mxu0 0.0
        %1213 = vmatprep.subr.mxu0 0.0
        %1214 = vmatpush2.msra.mxu0 0.0
        %1215 = vmatprep.subr.mxu0 0.0
        %1216 = vmatpush2.msra.mxu0 0.0
        %1217 = vmatprep.subr.mxu0 0.0
        %1218 = vmatpush2.msra.mxu0 0.0
        %1219 = vmatprep.subr.mxu0 0.0
        %1220 = vmatpush2.msra.mxu0 0.0
        %1221 = vmatprep.mubr.f32.mxu0 0.0
        %1222 = vmatmul.mubr.f32.gmra.mxu0 %v1155
        %v1223 = vpop.f32.mrf.mxu0
        %v1224 = vadd.f32 0.0, %v1223
        %v1225 = vpop.f32.mrf.mxu0
        %1226 = vdwg.mxu0
        %1228 = vrot.lane.b32.xlu0 %v1224, 16
        %v1229 = vpop.permute.xlu0 %1228
        %vm1231 = vcmask 195712
        %1232 = vst.msk [vmem:[#allocation5] sm:$0xff] %vm1231, %v1229
        %v1233 = vld [vmem:[#allocation2] sm:$0xff]
        %v1234 = vld [vmem:[#allocation3] sm:$0xff]
        %v1235 = vld [vmem:[#allocation3 + $0x8] sm:$0xff]
        %v1236 = vld [vmem:[#allocation4] sm:$0xff]
        %v1237 = vld [vmem:[#allocation4 + $0x8] sm:$0xff]
        %1239 = vrot.lane.b32.xlu0 %v1233, 104
        %v1240 = vpop.permute.xlu0 %1239
        %1243 = vrot.lane.b32.xlu0 %v1234, 104
        %v1244 = vpop.permute.xlu0 %1243
        %1245 = vrot.lane.b32.xlu0 %v1235, 104
        %v1246 = vpop.permute.xlu0 %1245
        %v1247 = vsel %vm691, %v1240, 0
        %v1249 = vsel %vm691, %v1244, 0
        %v1251 = vsel %vm691, %v1246, 0
        %1253 = vmatprep.subr.mxu0 0.0
        %1254 = vmatpush1.xpose.msra.mxu0 0.0
        %1255 = vmatprep.subr.mxu0 0.0
        %1256 = vmatpush1.xpose.msra.mxu0 0.0
        %1257 = vmatprep.subr.mxu0 0.0
        %1258 = vmatpush1.xpose.msra.mxu0 0.0
        %1259 = vmatprep.subr.mxu0 0.0
        %1260 = vmatpush1.xpose.msra.mxu0 0.0
        %1261 = vmatprep.subr.mxu0 0.0
        %1262 = vmatpush1.xpose.msra.mxu0 0.0
        %1263 = vmatprep.subr.mxu0 0.0
        %1264 = vmatpush1.xpose.msra.mxu0 0.0
        %1265 = vmatprep.subr.mxu0 0.0
        %1266 = vmatpush1.xpose.msra.mxu0 0.0
        %1267 = vmatprep.subr.mxu0 0.0
        %1268 = vmatpush1.xpose.msra.mxu0 0.0
        %1269 = vmatprep.subr.mxu0 0.0
        %1270 = vmatpush1.xpose.msra.mxu0 0.0
        %1271 = vmatprep.subr.mxu0 0.0
        %1272 = vmatpush1.xpose.msra.mxu0 0.0
        %1273 = vmatprep.subr.mxu0 0.0
        %1274 = vmatpush1.xpose.msra.mxu0 0.0
        %1275 = vmatprep.subr.mxu0 0.0
        %1276 = vmatpush1.xpose.msra.mxu0 0.0
        %1277 = vmatprep.subr.mxu0 0.0
        %1278 = vmatpush1.xpose.msra.mxu0 0.0
        %1279 = vmatprep.subr.mxu0 0.0
        %1280 = vmatpush1.xpose.msra.mxu0 0.0
        %1281 = vmatprep.subr.mxu0 0.0
        %1282 = vmatpush1.xpose.msra.mxu0 %v1251
        %1283 = vmatprep.subr.mxu0 0.0
        %1284 = vmatpush1.xpose.msra.mxu0 %v1249
        %1285 = vmatprep.subr.mxu0 0.0
        %1286 = vmatpush2.xpose.msra.mxu0 0.0
        %1287 = vmatprep.subr.mxu0 0.0
        %1288 = vmatpush2.xpose.msra.mxu0 0.0
        %1289 = vmatprep.subr.mxu0 0.0
        %1290 = vmatpush2.xpose.msra.mxu0 0.0
        %1291 = vmatprep.subr.mxu0 0.0
        %1292 = vmatpush2.xpose.msra.mxu0 0.0
        %1293 = vmatprep.subr.mxu0 0.0
        %1294 = vmatpush2.xpose.msra.mxu0 0.0
        %1295 = vmatprep.subr.mxu0 0.0
        %1296 = vmatpush2.xpose.msra.mxu0 0.0
        %1297 = vmatprep.subr.mxu0 0.0
        %1298 = vmatpush2.xpose.msra.mxu0 0.0
        %1299 = vmatprep.subr.mxu0 0.0
        %1300 = vmatpush2.xpose.msra.mxu0 0.0
        %1301 = vmatprep.subr.mxu0 0.0
        %1302 = vmatpush2.xpose.msra.mxu0 0.0
        %1303 = vmatprep.subr.mxu0 0.0
        %1304 = vmatpush2.xpose.msra.mxu0 0.0
        %1305 = vmatprep.subr.mxu0 0.0
        %1306 = vmatpush2.xpose.msra.mxu0 0.0
        %1307 = vmatprep.subr.mxu0 0.0
        %1308 = vmatpush2.xpose.msra.mxu0 0.0
        %1309 = vmatprep.subr.mxu0 0.0
        %1310 = vmatpush2.xpose.msra.mxu0 0.0
        %1311 = vmatprep.subr.mxu0 0.0
        %1312 = vmatpush2.xpose.msra.mxu0 0.0
        %1313 = vmatprep.subr.mxu0 0.0
        %1314 = vmatpush2.xpose.msra.mxu0 0.0
        %1315 = vmatprep.subr.mxu0 0.0
        %1316 = vmatpush2.xpose.msra.mxu0 0.0
        %1317 = vmatprep.mubr.f32.mxu0 0.0
        %1318 = vmatmul.mubr.f32.gmra.mxu0 %v1247
        %v1319 = vpop.f32.mrf.mxu0
        %v1320 = vadd.f32 0.0, %v1319
        %v1321 = vpop.f32.mrf.mxu0
        %1322 = vdwg.mxu0
        %v1323 = vsel %vm771, %v1320, -inf
        %1324 = vmax.xlane.f32.xlu0 %v1323
        %v1325 = vpop.xlane.xlu0 %1324
        %v1326 = vsub.f32 %v1320, %v1325
        %v1327 = vmul.f32 %v1326, 1.442695
        %v1328 = vpow.pop %v1327
        %v1329 = vsel %vm771, %v1328, 0.0
        %1330 = vadd.xlane.f32.xlu0 %v1329
        %v1331 = vpop.xlane.xlu0 %1330
        %v1332 = vrcp.pop %v1331
        %v1333 = vmul.f32 %v1328, %v1332
        %1336 = vrot.lane.b32.xlu0 %v1236, 104
        %v1337 = vpop.permute.xlu0 %1336
        %1338 = vrot.lane.b32.xlu0 %v1237, 104
        %v1339 = vpop.permute.xlu0 %1338
        %v1343 = vsel %vm771, %v1333, 0
        %1345 = vmatprep.subr.mxu0 0.0
        %1346 = vmatpush1.msra.mxu0 0.0
        %1347 = vmatprep.subr.mxu0 0.0
        %1348 = vmatpush1.msra.mxu0 0.0
        %1349 = vmatprep.subr.mxu0 0.0
        %1350 = vmatpush1.msra.mxu0 0.0
        %1351 = vmatprep.subr.mxu0 0.0
        %1352 = vmatpush1.msra.mxu0 0.0
        %1353 = vmatprep.subr.mxu0 0.0
        %1354 = vmatpush1.msra.mxu0 0.0
        %1355 = vmatprep.subr.mxu0 0.0
        %1356 = vmatpush1.msra.mxu0 0.0
        %1357 = vmatprep.subr.mxu0 0.0
        %1358 = vmatpush1.msra.mxu0 0.0
        %1359 = vmatprep.subr.mxu0 0.0
        %1360 = vmatpush1.msra.mxu0 0.0
        %1361 = vmatprep.subr.mxu0 0.0
        %1362 = vmatpush1.msra.mxu0 0.0
        %1363 = vmatprep.subr.mxu0 0.0
        %1364 = vmatpush1.msra.mxu0 0.0
        %1365 = vmatprep.subr.mxu0 0.0
        %1366 = vmatpush1.msra.mxu0 0.0
        %1367 = vmatprep.subr.mxu0 0.0
        %1368 = vmatpush1.msra.mxu0 0.0
        %1369 = vmatprep.subr.mxu0 0.0
        %1370 = vmatpush1.msra.mxu0 0.0
        %1371 = vmatprep.subr.mxu0 0.0
        %1372 = vmatpush1.msra.mxu0 0.0
        %1373 = vmatprep.subr.mxu0 0.0
        %1374 = vmatpush1.msra.mxu0 %v1339
        %1375 = vmatprep.subr.mxu0 0.0
        %1376 = vmatpush1.msra.mxu0 %v1337
        %1377 = vmatprep.subr.mxu0 0.0
        %1378 = vmatpush2.msra.mxu0 0.0
        %1379 = vmatprep.subr.mxu0 0.0
        %1380 = vmatpush2.msra.mxu0 0.0
        %1381 = vmatprep.subr.mxu0 0.0
        %1382 = vmatpush2.msra.mxu0 0.0
        %1383 = vmatprep.subr.mxu0 0.0
        %1384 = vmatpush2.msra.mxu0 0.0
        %1385 = vmatprep.subr.mxu0 0.0
        %1386 = vmatpush2.msra.mxu0 0.0
        %1387 = vmatprep.subr.mxu0 0.0
        %1388 = vmatpush2.msra.mxu0 0.0
        %1389 = vmatprep.subr.mxu0 0.0
        %1390 = vmatpush2.msra.mxu0 0.0
        %1391 = vmatprep.subr.mxu0 0.0
        %1392 = vmatpush2.msra.mxu0 0.0
        %1393 = vmatprep.subr.mxu0 0.0
        %1394 = vmatpush2.msra.mxu0 0.0
        %1395 = vmatprep.subr.mxu0 0.0
        %1396 = vmatpush2.msra.mxu0 0.0
        %1397 = vmatprep.subr.mxu0 0.0
        %1398 = vmatpush2.msra.mxu0 0.0
        %1399 = vmatprep.subr.mxu0 0.0
        %1400 = vmatpush2.msra.mxu0 0.0
        %1401 = vmatprep.subr.mxu0 0.0
        %1402 = vmatpush2.msra.mxu0 0.0
        %1403 = vmatprep.subr.mxu0 0.0
        %1404 = vmatpush2.msra.mxu0 0.0
        %1405 = vmatprep.subr.mxu0 0.0
        %1406 = vmatpush2.msra.mxu0 0.0
        %1407 = vmatprep.subr.mxu0 0.0
        %1408 = vmatpush2.msra.mxu0 0.0
        %1409 = vmatprep.mubr.f32.mxu0 0.0
        %1410 = vmatmul.mubr.f32.gmra.mxu0 %v1343
        %v1411 = vpop.f32.mrf.mxu0
        %v1412 = vadd.f32 0.0, %v1411
        %v1413 = vpop.f32.mrf.mxu0
        %1414 = vdwg.mxu0
        %1416 = vrot.lane.b32.xlu0 %v1412, 24
        %v1417 = vpop.permute.xlu0 %1416
        %vm1419 = vcmask 261312
        %1420 = vst.msk [vmem:[#allocation5] sm:$0xff] %vm1419, %v1417
        %v1421 = vld [vmem:[#allocation5] sm:$0xff]
        %v1422 = vpack.c.bf16 %v1421, %v1421
        %v1423 = vld [vmem:[#allocation15] sm:$0xf]
        %v1424 = vld [vmem:[#allocation15 + $0x4] sm:$0xf]
        %v1425 = vld [vmem:[#allocation15 + $0x8] sm:$0xf]
        %v1426 = vld [vmem:[#allocation15 + $0xc] sm:$0xf]
        %v1427 = vld [vmem:[%s9] sm:$0x1]
        %v1429 = vlaneseq
        %v1430 = vshrl.u32 %v1429, 7
        %v1431 = vsub.s32 0, %v1430
        %v1432 = vrot.slane %v1427, %v1431
        %v1438 = vunpack.c.l.b16 %v1423
        %v1439 = vunpack.c.l.b16 %v1424
        %v1440 = vunpack.c.l.b16 %v1425
        %v1441 = vunpack.c.l.b16 %v1426
        %v1442 = vpack.c.b16 %v1439, %v1438
        %v1443 = vpack.c.b16 %v1441, %v1440
        %v1447 = vsel %vm501, %v1422, 0
        %1449 = vmatprep.subr.bf16.mxu0 0
        %1450 = vmatpush1.bf16.msra.mxu0 0
        %1451 = vmatprep.subr.bf16.mxu0 0
        %1452 = vmatpush1.bf16.msra.mxu0 0
        %1453 = vmatprep.subr.bf16.mxu0 0
        %1454 = vmatpush1.bf16.msra.mxu0 0
        %1455 = vmatprep.subr.bf16.mxu0 0
        %1456 = vmatpush1.bf16.msra.mxu0 0
        %1457 = vmatprep.subr.bf16.mxu0 0
        %1458 = vmatpush1.bf16.msra.mxu0 0
        %1459 = vmatprep.subr.bf16.mxu0 0
        %1460 = vmatpush1.bf16.msra.mxu0 0
        %1461 = vmatprep.subr.bf16.mxu0 0
        %1462 = vmatpush1.bf16.msra.mxu0 %v1443
        %1463 = vmatprep.subr.bf16.mxu0 0
        %1464 = vmatpush1.bf16.msra.mxu0 %v1442
        %1465 = vmatprep.subr.bf16.mxu0 0
        %1466 = vmatpush2.bf16.msra.mxu0 0
        %1467 = vmatprep.subr.bf16.mxu0 0
        %1468 = vmatpush2.bf16.msra.mxu0 0
        %1469 = vmatprep.subr.bf16.mxu0 0
        %1470 = vmatpush2.bf16.msra.mxu0 0
        %1471 = vmatprep.subr.bf16.mxu0 0
        %1472 = vmatpush2.bf16.msra.mxu0 0
        %1473 = vmatprep.subr.bf16.mxu0 0
        %1474 = vmatpush2.bf16.msra.mxu0 0
        %1475 = vmatprep.subr.bf16.mxu0 0
        %1476 = vmatpush2.bf16.msra.mxu0 0
        %1477 = vmatprep.subr.bf16.mxu0 0
        %1478 = vmatpush2.bf16.msra.mxu0 0
        %1479 = vmatprep.subr.bf16.mxu0 0
        %1480 = vmatpush2.bf16.msra.mxu0 0
        %1481 = vmatprep.mubr.bf16.mxu0 0
        %1482 = vmatmul.mubr.bf16.gmra.mxu0 %v1447
        %v1483 = vpop.f32.mrf.mxu0
        %v1484 = vadd.f32 %v1432, %v1483
        %v1485 = vpop.f32.mrf.mxu0
        %v1486 = vpop.f32.mrf.mxu0
        %v1487 = vpop.f32.mrf.mxu0
        %1488 = vdwg.mxu0
        %1489 = vst.msk [vmem:[%s472] sm:$0xff] %vm501, %v1484
        %s1490 = sand.u32 %s260, 1
        %s1491 = scalar_lea.sflag [#allocation8], %s1490
        %s1492 = sand.u32 %s260, 1
        %s1493 = smul.addr %s1492, 8
        %s1494 = scalar_lea.vmem [#allocation17], %s1493
        // Predicated region
        $region85: #{tpu_custom_call.1} parent=59 // pred_check
          %p1495 = pneg %p270
        $region86: #{tpu_custom_call.1} parent=59 // pred_check_branch
          %1497 = sbr.rel (%p1495) target = $region88
        $region87: #{tpu_custom_call.1} parent=59 // pred_region
          %s1499 = ssub.s32 128, 128
          %1500 = vsyncadd %s1491, %s1499
          %s1501 = smul.addr %s32, 128
          %s1502 = scalar_lea.hbm %s10, %s1501
          %s1504 = sshll.u32 %s1494, 4
          %s1505 = int_to_ptr.vmem [resolvable:$true] %s1504
          %1507 = dma.vmem_to_hbm [thread:$0]  %s1505, 128, %s1502, %s1491
        $region88: #{tpu_custom_call.1} parent=59 // pred_fallthru
          _
      $region60: #{tpu_custom_call.1} parent=5 // pred_fallthru
        _
      %p1508 = scmp.le.s32.totalorder 2, %s27
      // Predicated region
      $region89: #{tpu_custom_call.1} parent=5 // pred_check
        %p1509 = pneg %p1508
      $region90: #{tpu_custom_call.1} parent=5 // pred_check_branch
        %1511 = sbr.rel (%p1509) target = $region92
      $region91: #{tpu_custom_call.1} parent=5 // pred_region
        %s1512 = ssub.s32 %s27, 2
        // Predicated region
        $region93: #{tpu_custom_call.1} parent=91 // pred_check
          %p1513 = pneg %p276
        $region94: #{tpu_custom_call.1} parent=91 // pred_check_branch
          %1515 = sbr.rel (%p1513) target = $region96
        $region95: #{tpu_custom_call.1} parent=91 // pred_region
          %s1516 = sand.u32 %s261, 1
          %s1517 = scalar_lea.sflag [#allocation8], %s1516
          %s1518 = sand.u32 %s261, 1
          %s1519 = smul.addr %s1518, 8
          %s1520 = scalar_lea.vmem [#allocation17], %s1519
          %1521 = dma.done %s1517, 128
        $region96: #{tpu_custom_call.1} parent=91 // pred_fallthru
          _
      $region92: #{tpu_custom_call.1} parent=5 // pred_fallthru
        _
    $region6: #{tpu_custom_call.1} parent=1 // loop_footer
      %s31 = sadd.s32 1, %s27
    $region7: #{tpu_custom_call.1} parent=1 // loop_footer_branch
      %26 = sbr.rel target = $region3
    $region8: #{tpu_custom_call.1} parent=1 // loop_exit
      _
    %1522 = vsyncpa [#allocation7], 1
    %s1523 = scalar_lea.sflag [#allocation7], 1
    %1524 = vsyncpa %s1523, 1
    %1525 = vsyncpa [#allocation10], 1
    %s1526 = scalar_lea.sflag [#allocation10], 1
    %1527 = vsyncpa %s1526, 1
    %1528 = vsyncpa [#allocation13], 1
    %1529 = vsyncpa [#allocation16], 1
    %1530 = vsyncpa [#allocation8], 1
    %s1531 = scalar_lea.sflag [#allocation8], 1
    %1532 = vsyncpa %s1531, 1

</llo_original>
